<compile_context>
chip_gen: v6e
topology: v6e:2x2x1
jax: 0.10.0
libtpu: 0.0.40
codegen_flags: <defaults>
</compile_context>

<pallas_src>
import math

import jax
import jax.numpy as jnp
from jax.experimental import pallas as pl
from jax.experimental.pallas import tpu as pltpu


# ---------------------------------------------------------------------------
# helpers
# ---------------------------------------------------------------------------
def _rup(n, m=128):
    return ((n + m - 1) // m) * m


def _pad2(a, rows, cols):
    return jnp.pad(a, ((0, rows - a.shape[0]), (0, cols - a.shape[1])))


# ---------------------------------------------------------------------------
# Pallas kernel: full ScDualGNNet forward (grid-less, everything in VMEM)
# ---------------------------------------------------------------------------
def _make_kernel(N, Zp, Kp, n_clusters, v):
    leak = 0.1
    bn_eps = 1e-5
    pow_exp = (v + 1.0) / 2.0
    inv_v = 1.0 / v

    def kernel(
        # data
        x_ref, eps_ref,
        # encoder layer 1 (Linear[no bias] + BN)
        w1_ref, g1_ref, be1_ref,
        # encoder layer 2 (Linear[no bias] + BN)
        w2_ref, g2_ref, be2_ref,
        # fused mu | log_var head
        wmuv_ref, bmuv_ref,
        # decoder layer 1 (Linear[no bias] + BN)
        wd1_ref, gd1_ref, bed1_ref,
        # decoder layer 2 (Linear[no bias] + BN)
        wd2_ref, gd2_ref, bed2_ref,
        # x_bar layer
        wxb_ref, bxb_ref,
        # cluster centers, pre-transposed (n_z_pad, n_clusters_pad), f32
        clu_ref,
        # outputs
        xbar_ref, xbar1_ref, z_ref, mu_ref, lv_ref, q_ref,
    ):
        bf16 = jnp.bfloat16

        def mm(h, w_ref):
            # bf16 MXU inputs, f32 accumulation.
            return jnp.dot(h.astype(bf16), w_ref[...],
                           preferred_element_type=jnp.float32)

        def bn_scale_shift(h, g_ref, b_ref):
            # training-mode BatchNorm1d, single reduction pass:
            #   var = E[h^2] - mean^2 (clamped), gamma folded into scale,
            #   beta - mean*scale folded into shift  ->  y = h*scale + shift
            m = jnp.mean(h, axis=0, keepdims=True)
            var = jnp.maximum(jnp.mean(h * h, axis=0, keepdims=True) - m * m, 0.0)
            scale = g_ref[...] * jax.lax.rsqrt(var + bn_eps)
            shift = b_ref[...] - m * scale
            return scale, shift

        def lrelu(h):
            return jnp.where(h > 0, h, leak * h)

        def bn_lrelu(h, g_ref, b_ref):
            scale, shift = bn_scale_shift(h, g_ref, b_ref)
            return lrelu(h * scale + shift)

        def bn_lrelu_two_halves(h, g_ref, b_ref):
            # h = [decode(mu); decode(z)] stacked along the batch axis.
            # The two halves need *separate* batch statistics to match two
            # independent decoder() calls in the reference model.
            h0, h1 = h[:N], h[N:]
            s0, t0 = bn_scale_shift(h0, g_ref, b_ref)
            s1, t1 = bn_scale_shift(h1, g_ref, b_ref)
            return jnp.concatenate([lrelu(h0 * s0 + t0),
                                    lrelu(h1 * s1 + t1)], axis=0)

        # ---------------- encoder ----------------
        # pre-BN biases are dropped (BN's mean subtraction cancels them).
        h = bn_lrelu(mm(x_ref[...], w1_ref), g1_ref, be1_ref)      # (N, E1p)
        h_e = bn_lrelu(mm(h, w2_ref), g2_ref, be2_ref)             # (N, E2p)

        # fused mu / log_var heads: one matmul, lane-aligned split.
        muv = mm(h_e, wmuv_ref) + bmuv_ref[...]                    # (N, 2*Zp)
        mu = muv[:, :Zp]
        log_var = muv[:, Zp:]

        # reparameterization: z = mu + eps * exp(0.5 * log_var)
        z = eps_ref[...] * jnp.exp(0.5 * log_var) + mu

        # ---------------- fused decoder over [mu; z] ----------------
        mz = jnp.concatenate([mu, z], axis=0)                      # (2N, Zp)
        d = bn_lrelu_two_halves(mm(mz, wd1_ref), gd1_ref, bed1_ref)
        d = bn_lrelu_two_halves(mm(d, wd2_ref), gd2_ref, bed2_ref)
        xb = mm(d, wxb_ref) + bxb_ref[...]                         # (2N, Ip)

        # ---------------- Student-t soft cluster assignment q -------------
        # Tiny matmul -> keep it in f32 on the MXU for accuracy.
        clu = clu_ref[...]                                         # (Zp, Kp) f32
        z_sq = jnp.sum(z * z, axis=1, keepdims=True)               # (N, 1)
        c_sq = jnp.sum(clu * clu, axis=0, keepdims=True)           # (1, Kp)
        cross = jnp.dot(z, clu, preferred_element_type=jnp.float32)  # (N, Kp)
        dist2 = jnp.maximum(z_sq + c_sq - 2.0 * cross, 0.0)

        qn = pl.reciprocal(1.0 + dist2 * inv_v, approx=True)
        if pow_exp != 1.0:   # v == 1 in ScDualGNNet -> exponent is exactly 1
            qn = qn ** pow_exp
        if Kp != n_clusters:
            # mask padded cluster columns so they don't enter the row sum
            col = jax.lax.broadcasted_iota(jnp.int32, (1, Kp), 1)
            qn = jnp.where(col < n_clusters, qn, 0.0)
        q = qn * pl.reciprocal(jnp.sum(qn, axis=1, keepdims=True), approx=True)

        # ---------------- lane-dense padded output stores -----------------
        xbar1_ref[...] = xb[:N]
        xbar_ref[...] = xb[N:]
        z_ref[...] = z
        mu_ref[...] = mu
        lv_ref[...] = log_var
        q_ref[...] = q

    return kernel


# ---------------------------------------------------------------------------
# Wrapper: pads feature dims to multiples of 128, casts matmul weights to bf16,
# fuses the mu/log_var heads, sizes the VMEM limit, slices outputs back.
# ---------------------------------------------------------------------------
def scdualgn_forward(x, eps, params, v=1.0):
    N, n_input = x.shape
    n_enc_1 = params["w1"].shape[1]
    n_enc_2 = params["w2"].shape[1]
    n_z = params["wmu"].shape[1]
    n_clusters = params["clu_t"].shape[1]
    assert N % 8 == 0, "batch must be a multiple of 8 (f32 sublane tile)"

    Ip, E1, E2, Zp, Kp = (_rup(d) for d in
                          (n_input, n_enc_1, n_enc_2, n_z, n_clusters))
    f32, bf16 = jnp.float32, jnp.bfloat16

    # data (x feeds only a matmul -> bf16; eps is used elementwise -> f32)
    x_p = _pad2(x.astype(f32), N, Ip).astype(bf16)
    eps_p = _pad2(eps.astype(f32), N, Zp)

    # big-matmul weights (bf16, pre-transposed (in, out), zero-padded)
    w1 = _pad2(params["w1"], Ip, E1).astype(bf16)
    w2 = _pad2(params["w2"], E1, E2).astype(bf16)
    wmuv = jnp.concatenate([_pad2(params["wmu"], E2, Zp),
                            _pad2(params["wlv"], E2, Zp)], axis=1).astype(bf16)
    wd1 = _pad2(params["wd1"], Zp, E2).astype(bf16)
    wd2 = _pad2(params["wd2"], E2, E1).astype(bf16)
    wxb = _pad2(params["wxb"], E1, Ip).astype(bf16)
    # cluster centers stay f32 (tiny matmul, accuracy of q matters)
    clu = _pad2(params["clu_t"], Zp, Kp).astype(f32)

    # biases / BN params kept in f32 (added after f32 accumulation)
    bmuv = jnp.concatenate([_pad2(params["bmu"], 1, Zp),
                            _pad2(params["blv"], 1, Zp)], axis=1).astype(f32)
    bxb = _pad2(params["bxb"], 1, Ip).astype(f32)
    g1, be1 = _pad2(params["g1"], 1, E1), _pad2(params["be1"], 1, E1)
    g2, be2 = _pad2(params["g2"], 1, E2), _pad2(params["be2"], 1, E2)
    gd1, bed1 = _pad2(params["gd1"], 1, E2), _pad2(params["bed1"], 1, E2)
    gd2, bed2 = _pad2(params["gd2"], 1, E1), _pad2(params["bed2"], 1, E1)

    flat = (
        x_p, eps_p,
        w1, g1, be1,
        w2, g2, be2,
        wmuv, bmuv,
        wd1, gd1, bed1,
        wd2, gd2, bed2,
        wxb, bxb,
        clu,
    )

    out_shape = (
        jax.ShapeDtypeStruct((N, Ip), f32),   # x_bar
        jax.ShapeDtypeStruct((N, Ip), f32),   # x_bar1
        jax.ShapeDtypeStruct((N, Zp), f32),   # z
        jax.ShapeDtypeStruct((N, Zp), f32),   # mu
        jax.ShapeDtypeStruct((N, Zp), f32),   # log_var
        jax.ShapeDtypeStruct((N, Kp), f32),   # q
    )

    # size the scoped VMEM limit from the actual buffers (+ intermediate
    # slabs), capped at 64 MiB so it is valid on all TPU generations.
    in_bytes = sum(int(math.prod(a.shape)) * jnp.dtype(a.dtype).itemsize
                   for a in flat)
    out_bytes = sum(int(math.prod(s.shape)) * 4 for s in out_shape)
    inter_bytes = 4 * (N * (E1 + E2 + 2 * Zp + Kp) + 2 * N * (E2 + E1 + Ip))
    vmem_limit = int(min(max(in_bytes + out_bytes + 2 * inter_bytes + (4 << 20),
                             32 << 20),
                         64 << 20))

    kernel = _make_kernel(N=N, Zp=Zp, Kp=Kp, n_clusters=n_clusters, v=float(v))

    xb, xb1, z, mu, lv, q = pl.pallas_call(
        kernel,
        out_shape=out_shape,
        in_specs=[pl.BlockSpec(memory_space=pltpu.MemorySpace.VMEM)
                  for _ in flat],
        out_specs=tuple(pl.BlockSpec(memory_space=pltpu.MemorySpace.VMEM)
                        for _ in out_shape),
        compiler_params=pltpu.CompilerParams(vmem_limit_bytes=vmem_limit),
    )(*flat)

    # slice the zero-padded lanes back off
    return (xb[:, :n_input], xb1[:, :n_input],
            z[:, :n_z], mu[:, :n_z], lv[:, :n_z], q[:, :n_clusters])


# ---------------------------------------------------------------------------
# Deterministic parameter init (mimics kaiming_uniform / zeros / xavier_normal)
# ---------------------------------------------------------------------------
def init_params(key, n_input, n_enc_1, n_enc_2, n_z, n_clusters):
    n_dec_1, n_dec_2 = n_enc_2, n_enc_1

    def kaiming_linear(k, fan_in, fan_out):
        bound = (6.0 / fan_in) ** 0.5        # kaiming_uniform_ default
        w = jax.random.uniform(k, (fan_in, fan_out), jnp.float32, -bound, bound)
        b = jnp.zeros((1, fan_out), jnp.float32)
        return w, b

    def bn_params(dim):
        return jnp.ones((1, dim), jnp.float32), jnp.zeros((1, dim), jnp.float32)

    keys = jax.random.split(key, 8)
    p = {}
    p["w1"], p["b1"] = kaiming_linear(keys[0], n_input, n_enc_1)
    p["g1"], p["be1"] = bn_params(n_enc_1)
    p["w2"], p["b2"] = kaiming_linear(keys[1], n_enc_1, n_enc_2)
    p["g2"], p["be2"] = bn_params(n_enc_2)
    p["wmu"], p["bmu"] = kaiming_linear(keys[2], n_enc_2, n_z)
    p["wlv"], p["blv"] = kaiming_linear(keys[3], n_enc_2, n_z)
    p["wd1"], p["bd1"] = kaiming_linear(keys[4], n_z, n_dec_1)
    p["gd1"], p["bed1"] = bn_params(n_dec_1)
    p["wd2"], p["bd2"] = kaiming_linear(keys[5], n_dec_1, n_dec_2)
    p["gd2"], p["bed2"] = bn_params(n_dec_2)
    p["wxb"], p["bxb"] = kaiming_linear(keys[6], n_dec_2, n_input)
    # xavier_normal_ on (n_clusters, n_z), stored transposed (n_z, n_clusters)
    std = (2.0 / (n_clusters + n_z)) ** 0.5
    clu = std * jax.random.normal(keys[7], (n_clusters, n_z), jnp.float32)
    p["clu_t"] = clu.T
    return p


# ---------------------------------------------------------------------------
# Pure-JAX reference (same math; emulates the bf16 matmul inputs the kernel
# uses for the encoder/decoder so the structural check can be tight; the
# cluster distance is pure f32, matching the kernel).
# ---------------------------------------------------------------------------
def reference_forward(x, eps, p, v=1.0, emulate_bf16_matmul=True):
    leak, bn_eps = 0.1, 1e-5

    def cast(a):
        if emulate_bf16_matmul:
            return a.astype(jnp.bfloat16).astype(jnp.float32)
        return a

    def lin(h, w, b):
        return jnp.dot(cast(h), cast(w),
                       preferred_element_type=jnp.float32) + b

    def bn(h, g, b):
        m = jnp.mean(h, axis=0, keepdims=True)
        var = jnp.mean((h - m) ** 2, axis=0, keepdims=True)
        return g * (h - m) / jnp.sqrt(var + bn_eps) + b

    def lrelu(h):
        return jnp.where(h > 0, h, leak * h)

    h = lrelu(bn(lin(x, p["w1"], p["b1"]), p["g1"], p["be1"]))
    h_e = lrelu(bn(lin(h, p["w2"], p["b2"]), p["g2"], p["be2"]))
    mu = lin(h_e, p["wmu"], p["bmu"])
    log_var = lin(h_e, p["wlv"], p["blv"])

    def decode(zz):
        d = lrelu(bn(lin(zz, p["wd1"], p["bd1"]), p["gd1"], p["bed1"]))
        d = lrelu(bn(lin(d, p["wd2"], p["bd2"]), p["gd2"], p["bed2"]))
        return lin(d, p["wxb"], p["bxb"])

    x_bar1 = decode(mu)
    z = eps * jnp.exp(0.5 * log_var) + mu
    x_bar = decode(z)

    clu = p["clu_t"].T                                          # (K, n_z) f32
    dist2 = jnp.sum((z[:, None, :] - clu[None, :, :]) ** 2, axis=2)
    q = 1.0 / (1.0 + dist2 / v)
    q = q ** ((v + 1.0) / 2.0)
    q = q / jnp.sum(q, axis=1, keepdims=True)
    return x_bar, x_bar1, z, mu, log_var, q


# ---------------------------------------------------------------------------
if __name__ == "__main__":
    # small shapes consistent with the module (2500/512/128/32 downscaled)
    N, n_input, n_enc_1, n_enc_2, n_z, n_clusters = 8, 128, 64, 32, 8, 4

    key = jax.random.PRNGKey(0)
    k_param, k_x, k_eps = jax.random.split(key, 3)

    params = init_params(k_param, n_input, n_enc_1, n_enc_2, n_z, n_clusters)
    x = jax.random.normal(k_x, (N, n_input), jnp.float32)
    # eps for the reparameterization trick (randn_like in torch) is generated
    # here in plain JAX and fed to the kernel so the run is deterministic.
    eps = jax.random.normal(k_eps, (N, n_z), jnp.float32)

    outs = scdualgn_forward(x, eps, params)
    outs = jax.block_until_ready(outs)
    x_bar, x_bar1, z, mu, log_var, q = outs

    refs = reference_forward(x, eps, params)
    names = ("x_bar", "x_bar1", "z", "mu", "log_var", "q")
    for name, got, ref in zip(names, outs, refs):
        assert got.shape == ref.shape, (name, got.shape, ref.shape)
        assert got.dtype == ref.dtype, (name, got.dtype, ref.dtype)
        assert bool(jnp.all(jnp.isfinite(got))), name
        assert bool(jnp.allclose(got, ref, rtol=1e-2, atol=1e-2)), name
    # q rows sum to ~1 (approx reciprocal used for the normalization)
    assert bool(jnp.allclose(jnp.sum(q, axis=1), 1.0, atol=5e-3))

    print("KERNEL_OK")
</pallas_src>

<mosaic_0001>
module attributes {stable_mosaic.version = 11 : i64} {
  func.func @kernel(%arg0: memref<8x128xbf16, #tpu.memory_space<vmem>>, %arg1: memref<8x128xf32, #tpu.memory_space<vmem>>, %arg2: memref<128x128xbf16, #tpu.memory_space<vmem>>, %arg3: memref<1x128xf32, #tpu.memory_space<vmem>>, %arg4: memref<1x128xf32, #tpu.memory_space<vmem>>, %arg5: memref<128x128xbf16, #tpu.memory_space<vmem>>, %arg6: memref<1x128xf32, #tpu.memory_space<vmem>>, %arg7: memref<1x128xf32, #tpu.memory_space<vmem>>, %arg8: memref<128x256xbf16, #tpu.memory_space<vmem>>, %arg9: memref<1x256xf32, #tpu.memory_space<vmem>>, %arg10: memref<128x128xbf16, #tpu.memory_space<vmem>>, %arg11: memref<1x128xf32, #tpu.memory_space<vmem>>, %arg12: memref<1x128xf32, #tpu.memory_space<vmem>>, %arg13: memref<128x128xbf16, #tpu.memory_space<vmem>>, %arg14: memref<1x128xf32, #tpu.memory_space<vmem>>, %arg15: memref<1x128xf32, #tpu.memory_space<vmem>>, %arg16: memref<128x128xbf16, #tpu.memory_space<vmem>>, %arg17: memref<1x128xf32, #tpu.memory_space<vmem>>, %arg18: memref<128x128xf32, #tpu.memory_space<vmem>>, %arg19: memref<8x128xf32, #tpu.memory_space<vmem>>, %arg20: memref<8x128xf32, #tpu.memory_space<vmem>>, %arg21: memref<8x128xf32, #tpu.memory_space<vmem>>, %arg22: memref<8x128xf32, #tpu.memory_space<vmem>>, %arg23: memref<8x128xf32, #tpu.memory_space<vmem>>, %arg24: memref<8x128xf32, #tpu.memory_space<vmem>>) attributes {dimension_semantics = [], scalar_prefetch = 0 : i64, scratch_operands = 0 : i64, tpu.core_type = #tpu.core_type<tc>} {
    %c0 = arith.constant 0 : index
    %c0_0 = arith.constant 0 : index
    %0 = vector.load %arg0[%c0, %c0_0] : memref<8x128xbf16, #tpu.memory_space<vmem>>, vector<8x128xbf16>
    %c0_1 = arith.constant 0 : index
    %c0_2 = arith.constant 0 : index
    %1 = vector.load %arg2[%c0_1, %c0_2] : memref<128x128xbf16, #tpu.memory_space<vmem>>, vector<128x128xbf16>
    %cst = arith.constant dense<0.000000e+00> : vector<8x128xf32>
    %2 = tpu.matmul %0, %1, %cst {dimension_numbers = #tpu.dot_dimension_numbers<[1], [0], [0], [1], [0, 0, 1, 1], [], []>} : vector<8x128xbf16>, vector<128x128xbf16>, vector<8x128xf32> -> vector<8x128xf32>
    %cst_3 = arith.constant dense<0.000000e+00> : vector<128xf32>
    %3 = vector.multi_reduction <add>, %2, %cst_3 [0] : vector<8x128xf32> to vector<128xf32>
    %4 = vector.shape_cast %3 : vector<128xf32> to vector<1x128xf32>
    %cst_4 = arith.constant 8.000000e+00 : f32
    %5 = vector.broadcast %cst_4 : f32 to vector<1x128xf32>
    %6 = arith.divf %4, %5 : vector<1x128xf32>
    %7 = arith.mulf %2, %2 : vector<8x128xf32>
    %cst_5 = arith.constant dense<0.000000e+00> : vector<128xf32>
    %8 = vector.multi_reduction <add>, %7, %cst_5 [0] : vector<8x128xf32> to vector<128xf32>
    %9 = vector.shape_cast %8 : vector<128xf32> to vector<1x128xf32>
    %cst_6 = arith.constant 8.000000e+00 : f32
    %10 = vector.broadcast %cst_6 : f32 to vector<1x128xf32>
    %11 = arith.divf %9, %10 : vector<1x128xf32>
    %12 = arith.mulf %6, %6 : vector<1x128xf32>
    %13 = arith.subf %11, %12 : vector<1x128xf32>
    %cst_7 = arith.constant 0.000000e+00 : f32
    %14 = vector.broadcast %cst_7 : f32 to vector<1x128xf32>
    %15 = arith.maximumf %13, %14 : vector<1x128xf32>
    %c0_8 = arith.constant 0 : index
    %c0_9 = arith.constant 0 : index
    %16 = vector.load %arg3[%c0_8, %c0_9] : memref<1x128xf32, #tpu.memory_space<vmem>>, vector<1x128xf32>
    %cst_10 = arith.constant 9.99999974E-6 : f32
    %17 = vector.broadcast %cst_10 : f32 to vector<1x128xf32>
    %18 = arith.addf %15, %17 : vector<1x128xf32>
    %19 = math.rsqrt %18 : vector<1x128xf32>
    %20 = arith.mulf %16, %19 : vector<1x128xf32>
    %c0_11 = arith.constant 0 : index
    %c0_12 = arith.constant 0 : index
    %21 = vector.load %arg4[%c0_11, %c0_12] : memref<1x128xf32, #tpu.memory_space<vmem>>, vector<1x128xf32>
    %22 = arith.mulf %6, %20 : vector<1x128xf32>
    %23 = arith.subf %21, %22 : vector<1x128xf32>
    %24 = vector.broadcast %20 : vector<1x128xf32> to vector<8x128xf32>
    %25 = arith.mulf %2, %24 : vector<8x128xf32>
    %26 = vector.broadcast %23 : vector<1x128xf32> to vector<8x128xf32>
    %27 = arith.addf %25, %26 : vector<8x128xf32>
    %cst_13 = arith.constant 0.000000e+00 : f32
    %28 = vector.broadcast %cst_13 : f32 to vector<8x128xf32>
    %29 = arith.cmpf ogt, %27, %28 : vector<8x128xf32>
    %cst_14 = arith.constant 1.000000e-01 : f32
    %30 = vector.broadcast %cst_14 : f32 to vector<8x128xf32>
    %31 = arith.mulf %30, %27 : vector<8x128xf32>
    %32 = arith.select %29, %27, %31 : vector<8x128xi1>, vector<8x128xf32>
    %33 = arith.truncf %32 : vector<8x128xf32> to vector<8x128xbf16>
    %c0_15 = arith.constant 0 : index
    %c0_16 = arith.constant 0 : index
    %34 = vector.load %arg5[%c0_15, %c0_16] : memref<128x128xbf16, #tpu.memory_space<vmem>>, vector<128x128xbf16>
    %cst_17 = arith.constant dense<0.000000e+00> : vector<8x128xf32>
    %35 = tpu.matmul %33, %34, %cst_17 {dimension_numbers = #tpu.dot_dimension_numbers<[1], [0], [0], [1], [0, 0, 1, 1], [], []>} : vector<8x128xbf16>, vector<128x128xbf16>, vector<8x128xf32> -> vector<8x128xf32>
    %cst_18 = arith.constant dense<0.000000e+00> : vector<128xf32>
    %36 = vector.multi_reduction <add>, %35, %cst_18 [0] : vector<8x128xf32> to vector<128xf32>
    %37 = vector.shape_cast %36 : vector<128xf32> to vector<1x128xf32>
    %cst_19 = arith.constant 8.000000e+00 : f32
    %38 = vector.broadcast %cst_19 : f32 to vector<1x128xf32>
    %39 = arith.divf %37, %38 : vector<1x128xf32>
    %40 = arith.mulf %35, %35 : vector<8x128xf32>
    %cst_20 = arith.constant dense<0.000000e+00> : vector<128xf32>
    %41 = vector.multi_reduction <add>, %40, %cst_20 [0] : vector<8x128xf32> to vector<128xf32>
    %42 = vector.shape_cast %41 : vector<128xf32> to vector<1x128xf32>
    %cst_21 = arith.constant 8.000000e+00 : f32
    %43 = vector.broadcast %cst_21 : f32 to vector<1x128xf32>
    %44 = arith.divf %42, %43 : vector<1x128xf32>
    %45 = arith.mulf %39, %39 : vector<1x128xf32>
    %46 = arith.subf %44, %45 : vector<1x128xf32>
    %cst_22 = arith.constant 0.000000e+00 : f32
    %47 = vector.broadcast %cst_22 : f32 to vector<1x128xf32>
    %48 = arith.maximumf %46, %47 : vector<1x128xf32>
    %c0_23 = arith.constant 0 : index
    %c0_24 = arith.constant 0 : index
    %49 = vector.load %arg6[%c0_23, %c0_24] : memref<1x128xf32, #tpu.memory_space<vmem>>, vector<1x128xf32>
    %cst_25 = arith.constant 9.99999974E-6 : f32
    %50 = vector.broadcast %cst_25 : f32 to vector<1x128xf32>
    %51 = arith.addf %48, %50 : vector<1x128xf32>
    %52 = math.rsqrt %51 : vector<1x128xf32>
    %53 = arith.mulf %49, %52 : vector<1x128xf32>
    %c0_26 = arith.constant 0 : index
    %c0_27 = arith.constant 0 : index
    %54 = vector.load %arg7[%c0_26, %c0_27] : memref<1x128xf32, #tpu.memory_space<vmem>>, vector<1x128xf32>
    %55 = arith.mulf %39, %53 : vector<1x128xf32>
    %56 = arith.subf %54, %55 : vector<1x128xf32>
    %57 = vector.broadcast %53 : vector<1x128xf32> to vector<8x128xf32>
    %58 = arith.mulf %35, %57 : vector<8x128xf32>
    %59 = vector.broadcast %56 : vector<1x128xf32> to vector<8x128xf32>
    %60 = arith.addf %58, %59 : vector<8x128xf32>
    %cst_28 = arith.constant 0.000000e+00 : f32
    %61 = vector.broadcast %cst_28 : f32 to vector<8x128xf32>
    %62 = arith.cmpf ogt, %60, %61 : vector<8x128xf32>
    %cst_29 = arith.constant 1.000000e-01 : f32
    %63 = vector.broadcast %cst_29 : f32 to vector<8x128xf32>
    %64 = arith.mulf %63, %60 : vector<8x128xf32>
    %65 = arith.select %62, %60, %64 : vector<8x128xi1>, vector<8x128xf32>
    %66 = arith.truncf %65 : vector<8x128xf32> to vector<8x128xbf16>
    %c0_30 = arith.constant 0 : index
    %c0_31 = arith.constant 0 : index
    %67 = vector.load %arg8[%c0_30, %c0_31] : memref<128x256xbf16, #tpu.memory_space<vmem>>, vector<128x256xbf16>
    %cst_32 = arith.constant dense<0.000000e+00> : vector<8x256xf32>
    %68 = tpu.matmul %66, %67, %cst_32 {dimension_numbers = #tpu.dot_dimension_numbers<[1], [0], [0], [1], [0, 0, 1, 1], [], []>} : vector<8x128xbf16>, vector<128x256xbf16>, vector<8x256xf32> -> vector<8x256xf32>
    %c0_33 = arith.constant 0 : index
    %c0_34 = arith.constant 0 : index
    %69 = vector.load %arg9[%c0_33, %c0_34] : memref<1x256xf32, #tpu.memory_space<vmem>>, vector<1x256xf32>
    %70 = vector.broadcast %69 : vector<1x256xf32> to vector<8x256xf32>
    %71 = arith.addf %68, %70 : vector<8x256xf32>
    %72 = vector.extract_strided_slice %71 {offsets = [0, 0], sizes = [8, 128], strides = [1, 1]} : vector<8x256xf32> to vector<8x128xf32>
    %73 = vector.extract_strided_slice %71 {offsets = [0, 128], sizes = [8, 128], strides = [1, 1]} : vector<8x256xf32> to vector<8x128xf32>
    %c0_35 = arith.constant 0 : index
    %c0_36 = arith.constant 0 : index
    %74 = vector.load %arg1[%c0_35, %c0_36] : memref<8x128xf32, #tpu.memory_space<vmem>>, vector<8x128xf32>
    %cst_37 = arith.constant 5.000000e-01 : f32
    %75 = vector.broadcast %cst_37 : f32 to vector<8x128xf32>
    %76 = arith.mulf %75, %73 : vector<8x128xf32>
    %77 = math.exp %76 : vector<8x128xf32>
    %78 = arith.mulf %74, %77 : vector<8x128xf32>
    %79 = arith.addf %78, %72 : vector<8x128xf32>
    %80 = tpu.concatenate %72, %79 in 0 : vector<8x128xf32>, vector<8x128xf32> -> vector<16x128xf32>
    %81 = arith.truncf %80 : vector<16x128xf32> to vector<16x128xbf16>
    %c0_38 = arith.constant 0 : index
    %c0_39 = arith.constant 0 : index
    %82 = vector.load %arg10[%c0_38, %c0_39] : memref<128x128xbf16, #tpu.memory_space<vmem>>, vector<128x128xbf16>
    %cst_40 = arith.constant dense<0.000000e+00> : vector<16x128xf32>
    %83 = tpu.matmul %81, %82, %cst_40 {dimension_numbers = #tpu.dot_dimension_numbers<[1], [0], [0], [1], [0, 0, 1, 1], [], []>} : vector<16x128xbf16>, vector<128x128xbf16>, vector<16x128xf32> -> vector<16x128xf32>
    %84 = vector.extract_strided_slice %83 {offsets = [0, 0], sizes = [8, 128], strides = [1, 1]} : vector<16x128xf32> to vector<8x128xf32>
    %85 = vector.extract_strided_slice %83 {offsets = [8, 0], sizes = [8, 128], strides = [1, 1]} : vector<16x128xf32> to vector<8x128xf32>
    %cst_41 = arith.constant dense<0.000000e+00> : vector<128xf32>
    %86 = vector.multi_reduction <add>, %84, %cst_41 [0] : vector<8x128xf32> to vector<128xf32>
    %87 = vector.shape_cast %86 : vector<128xf32> to vector<1x128xf32>
    %cst_42 = arith.constant 8.000000e+00 : f32
    %88 = vector.broadcast %cst_42 : f32 to vector<1x128xf32>
    %89 = arith.divf %87, %88 : vector<1x128xf32>
    %90 = arith.mulf %84, %84 : vector<8x128xf32>
    %cst_43 = arith.constant dense<0.000000e+00> : vector<128xf32>
    %91 = vector.multi_reduction <add>, %90, %cst_43 [0] : vector<8x128xf32> to vector<128xf32>
    %92 = vector.shape_cast %91 : vector<128xf32> to vector<1x128xf32>
    %cst_44 = arith.constant 8.000000e+00 : f32
    %93 = vector.broadcast %cst_44 : f32 to vector<1x128xf32>
    %94 = arith.divf %92, %93 : vector<1x128xf32>
    %95 = arith.mulf %89, %89 : vector<1x128xf32>
    %96 = arith.subf %94, %95 : vector<1x128xf32>
    %cst_45 = arith.constant 0.000000e+00 : f32
    %97 = vector.broadcast %cst_45 : f32 to vector<1x128xf32>
    %98 = arith.maximumf %96, %97 : vector<1x128xf32>
    %c0_46 = arith.constant 0 : index
    %c0_47 = arith.constant 0 : index
    %99 = vector.load %arg11[%c0_46, %c0_47] : memref<1x128xf32, #tpu.memory_space<vmem>>, vector<1x128xf32>
    %cst_48 = arith.constant 9.99999974E-6 : f32
    %100 = vector.broadcast %cst_48 : f32 to vector<1x128xf32>
    %101 = arith.addf %98, %100 : vector<1x128xf32>
    %102 = math.rsqrt %101 : vector<1x128xf32>
    %103 = arith.mulf %99, %102 : vector<1x128xf32>
    %c0_49 = arith.constant 0 : index
    %c0_50 = arith.constant 0 : index
    %104 = vector.load %arg12[%c0_49, %c0_50] : memref<1x128xf32, #tpu.memory_space<vmem>>, vector<1x128xf32>
    %105 = arith.mulf %89, %103 : vector<1x128xf32>
    %106 = arith.subf %104, %105 : vector<1x128xf32>
    %cst_51 = arith.constant dense<0.000000e+00> : vector<128xf32>
    %107 = vector.multi_reduction <add>, %85, %cst_51 [0] : vector<8x128xf32> to vector<128xf32>
    %108 = vector.shape_cast %107 : vector<128xf32> to vector<1x128xf32>
    %cst_52 = arith.constant 8.000000e+00 : f32
    %109 = vector.broadcast %cst_52 : f32 to vector<1x128xf32>
    %110 = arith.divf %108, %109 : vector<1x128xf32>
    %111 = arith.mulf %85, %85 : vector<8x128xf32>
    %cst_53 = arith.constant dense<0.000000e+00> : vector<128xf32>
    %112 = vector.multi_reduction <add>, %111, %cst_53 [0] : vector<8x128xf32> to vector<128xf32>
    %113 = vector.shape_cast %112 : vector<128xf32> to vector<1x128xf32>
    %cst_54 = arith.constant 8.000000e+00 : f32
    %114 = vector.broadcast %cst_54 : f32 to vector<1x128xf32>
    %115 = arith.divf %113, %114 : vector<1x128xf32>
    %116 = arith.mulf %110, %110 : vector<1x128xf32>
    %117 = arith.subf %115, %116 : vector<1x128xf32>
    %cst_55 = arith.constant 0.000000e+00 : f32
    %118 = vector.broadcast %cst_55 : f32 to vector<1x128xf32>
    %119 = arith.maximumf %117, %118 : vector<1x128xf32>
    %c0_56 = arith.constant 0 : index
    %c0_57 = arith.constant 0 : index
    %120 = vector.load %arg11[%c0_56, %c0_57] : memref<1x128xf32, #tpu.memory_space<vmem>>, vector<1x128xf32>
    %cst_58 = arith.constant 9.99999974E-6 : f32
    %121 = vector.broadcast %cst_58 : f32 to vector<1x128xf32>
    %122 = arith.addf %119, %121 : vector<1x128xf32>
    %123 = math.rsqrt %122 : vector<1x128xf32>
    %124 = arith.mulf %120, %123 : vector<1x128xf32>
    %c0_59 = arith.constant 0 : index
    %c0_60 = arith.constant 0 : index
    %125 = vector.load %arg12[%c0_59, %c0_60] : memref<1x128xf32, #tpu.memory_space<vmem>>, vector<1x128xf32>
    %126 = arith.mulf %110, %124 : vector<1x128xf32>
    %127 = arith.subf %125, %126 : vector<1x128xf32>
    %128 = vector.broadcast %103 : vector<1x128xf32> to vector<8x128xf32>
    %129 = arith.mulf %84, %128 : vector<8x128xf32>
    %130 = vector.broadcast %106 : vector<1x128xf32> to vector<8x128xf32>
    %131 = arith.addf %129, %130 : vector<8x128xf32>
    %cst_61 = arith.constant 0.000000e+00 : f32
    %132 = vector.broadcast %cst_61 : f32 to vector<8x128xf32>
    %133 = arith.cmpf ogt, %131, %132 : vector<8x128xf32>
    %cst_62 = arith.constant 1.000000e-01 : f32
    %134 = vector.broadcast %cst_62 : f32 to vector<8x128xf32>
    %135 = arith.mulf %134, %131 : vector<8x128xf32>
    %136 = arith.select %133, %131, %135 : vector<8x128xi1>, vector<8x128xf32>
    %137 = vector.broadcast %124 : vector<1x128xf32> to vector<8x128xf32>
    %138 = arith.mulf %85, %137 : vector<8x128xf32>
    %139 = vector.broadcast %127 : vector<1x128xf32> to vector<8x128xf32>
    %140 = arith.addf %138, %139 : vector<8x128xf32>
    %cst_63 = arith.constant 0.000000e+00 : f32
    %141 = vector.broadcast %cst_63 : f32 to vector<8x128xf32>
    %142 = arith.cmpf ogt, %140, %141 : vector<8x128xf32>
    %cst_64 = arith.constant 1.000000e-01 : f32
    %143 = vector.broadcast %cst_64 : f32 to vector<8x128xf32>
    %144 = arith.mulf %143, %140 : vector<8x128xf32>
    %145 = arith.select %142, %140, %144 : vector<8x128xi1>, vector<8x128xf32>
    %146 = tpu.concatenate %136, %145 in 0 : vector<8x128xf32>, vector<8x128xf32> -> vector<16x128xf32>
    %147 = arith.truncf %146 : vector<16x128xf32> to vector<16x128xbf16>
    %c0_65 = arith.constant 0 : index
    %c0_66 = arith.constant 0 : index
    %148 = vector.load %arg13[%c0_65, %c0_66] : memref<128x128xbf16, #tpu.memory_space<vmem>>, vector<128x128xbf16>
    %cst_67 = arith.constant dense<0.000000e+00> : vector<16x128xf32>
    %149 = tpu.matmul %147, %148, %cst_67 {dimension_numbers = #tpu.dot_dimension_numbers<[1], [0], [0], [1], [0, 0, 1, 1], [], []>} : vector<16x128xbf16>, vector<128x128xbf16>, vector<16x128xf32> -> vector<16x128xf32>
    %150 = vector.extract_strided_slice %149 {offsets = [0, 0], sizes = [8, 128], strides = [1, 1]} : vector<16x128xf32> to vector<8x128xf32>
    %151 = vector.extract_strided_slice %149 {offsets = [8, 0], sizes = [8, 128], strides = [1, 1]} : vector<16x128xf32> to vector<8x128xf32>
    %cst_68 = arith.constant dense<0.000000e+00> : vector<128xf32>
    %152 = vector.multi_reduction <add>, %150, %cst_68 [0] : vector<8x128xf32> to vector<128xf32>
    %153 = vector.shape_cast %152 : vector<128xf32> to vector<1x128xf32>
    %cst_69 = arith.constant 8.000000e+00 : f32
    %154 = vector.broadcast %cst_69 : f32 to vector<1x128xf32>
    %155 = arith.divf %153, %154 : vector<1x128xf32>
    %156 = arith.mulf %150, %150 : vector<8x128xf32>
    %cst_70 = arith.constant dense<0.000000e+00> : vector<128xf32>
    %157 = vector.multi_reduction <add>, %156, %cst_70 [0] : vector<8x128xf32> to vector<128xf32>
    %158 = vector.shape_cast %157 : vector<128xf32> to vector<1x128xf32>
    %cst_71 = arith.constant 8.000000e+00 : f32
    %159 = vector.broadcast %cst_71 : f32 to vector<1x128xf32>
    %160 = arith.divf %158, %159 : vector<1x128xf32>
    %161 = arith.mulf %155, %155 : vector<1x128xf32>
    %162 = arith.subf %160, %161 : vector<1x128xf32>
    %cst_72 = arith.constant 0.000000e+00 : f32
    %163 = vector.broadcast %cst_72 : f32 to vector<1x128xf32>
    %164 = arith.maximumf %162, %163 : vector<1x128xf32>
    %c0_73 = arith.constant 0 : index
    %c0_74 = arith.constant 0 : index
    %165 = vector.load %arg14[%c0_73, %c0_74] : memref<1x128xf32, #tpu.memory_space<vmem>>, vector<1x128xf32>
    %cst_75 = arith.constant 9.99999974E-6 : f32
    %166 = vector.broadcast %cst_75 : f32 to vector<1x128xf32>
    %167 = arith.addf %164, %166 : vector<1x128xf32>
    %168 = math.rsqrt %167 : vector<1x128xf32>
    %169 = arith.mulf %165, %168 : vector<1x128xf32>
    %c0_76 = arith.constant 0 : index
    %c0_77 = arith.constant 0 : index
    %170 = vector.load %arg15[%c0_76, %c0_77] : memref<1x128xf32, #tpu.memory_space<vmem>>, vector<1x128xf32>
    %171 = arith.mulf %155, %169 : vector<1x128xf32>
    %172 = arith.subf %170, %171 : vector<1x128xf32>
    %cst_78 = arith.constant dense<0.000000e+00> : vector<128xf32>
    %173 = vector.multi_reduction <add>, %151, %cst_78 [0] : vector<8x128xf32> to vector<128xf32>
    %174 = vector.shape_cast %173 : vector<128xf32> to vector<1x128xf32>
    %cst_79 = arith.constant 8.000000e+00 : f32
    %175 = vector.broadcast %cst_79 : f32 to vector<1x128xf32>
    %176 = arith.divf %174, %175 : vector<1x128xf32>
    %177 = arith.mulf %151, %151 : vector<8x128xf32>
    %cst_80 = arith.constant dense<0.000000e+00> : vector<128xf32>
    %178 = vector.multi_reduction <add>, %177, %cst_80 [0] : vector<8x128xf32> to vector<128xf32>
    %179 = vector.shape_cast %178 : vector<128xf32> to vector<1x128xf32>
    %cst_81 = arith.constant 8.000000e+00 : f32
    %180 = vector.broadcast %cst_81 : f32 to vector<1x128xf32>
    %181 = arith.divf %179, %180 : vector<1x128xf32>
    %182 = arith.mulf %176, %176 : vector<1x128xf32>
    %183 = arith.subf %181, %182 : vector<1x128xf32>
    %cst_82 = arith.constant 0.000000e+00 : f32
    %184 = vector.broadcast %cst_82 : f32 to vector<1x128xf32>
    %185 = arith.maximumf %183, %184 : vector<1x128xf32>
    %c0_83 = arith.constant 0 : index
    %c0_84 = arith.constant 0 : index
    %186 = vector.load %arg14[%c0_83, %c0_84] : memref<1x128xf32, #tpu.memory_space<vmem>>, vector<1x128xf32>
    %cst_85 = arith.constant 9.99999974E-6 : f32
    %187 = vector.broadcast %cst_85 : f32 to vector<1x128xf32>
    %188 = arith.addf %185, %187 : vector<1x128xf32>
    %189 = math.rsqrt %188 : vector<1x128xf32>
    %190 = arith.mulf %186, %189 : vector<1x128xf32>
    %c0_86 = arith.constant 0 : index
    %c0_87 = arith.constant 0 : index
    %191 = vector.load %arg15[%c0_86, %c0_87] : memref<1x128xf32, #tpu.memory_space<vmem>>, vector<1x128xf32>
    %192 = arith.mulf %176, %190 : vector<1x128xf32>
    %193 = arith.subf %191, %192 : vector<1x128xf32>
    %194 = vector.broadcast %169 : vector<1x128xf32> to vector<8x128xf32>
    %195 = arith.mulf %150, %194 : vector<8x128xf32>
    %196 = vector.broadcast %172 : vector<1x128xf32> to vector<8x128xf32>
    %197 = arith.addf %195, %196 : vector<8x128xf32>
    %cst_88 = arith.constant 0.000000e+00 : f32
    %198 = vector.broadcast %cst_88 : f32 to vector<8x128xf32>
    %199 = arith.cmpf ogt, %197, %198 : vector<8x128xf32>
    %cst_89 = arith.constant 1.000000e-01 : f32
    %200 = vector.broadcast %cst_89 : f32 to vector<8x128xf32>
    %201 = arith.mulf %200, %197 : vector<8x128xf32>
    %202 = arith.select %199, %197, %201 : vector<8x128xi1>, vector<8x128xf32>
    %203 = vector.broadcast %190 : vector<1x128xf32> to vector<8x128xf32>
    %204 = arith.mulf %151, %203 : vector<8x128xf32>
    %205 = vector.broadcast %193 : vector<1x128xf32> to vector<8x128xf32>
    %206 = arith.addf %204, %205 : vector<8x128xf32>
    %cst_90 = arith.constant 0.000000e+00 : f32
    %207 = vector.broadcast %cst_90 : f32 to vector<8x128xf32>
    %208 = arith.cmpf ogt, %206, %207 : vector<8x128xf32>
    %cst_91 = arith.constant 1.000000e-01 : f32
    %209 = vector.broadcast %cst_91 : f32 to vector<8x128xf32>
    %210 = arith.mulf %209, %206 : vector<8x128xf32>
    %211 = arith.select %208, %206, %210 : vector<8x128xi1>, vector<8x128xf32>
    %212 = tpu.concatenate %202, %211 in 0 : vector<8x128xf32>, vector<8x128xf32> -> vector<16x128xf32>
    %213 = arith.truncf %212 : vector<16x128xf32> to vector<16x128xbf16>
    %c0_92 = arith.constant 0 : index
    %c0_93 = arith.constant 0 : index
    %214 = vector.load %arg16[%c0_92, %c0_93] : memref<128x128xbf16, #tpu.memory_space<vmem>>, vector<128x128xbf16>
    %cst_94 = arith.constant dense<0.000000e+00> : vector<16x128xf32>
    %215 = tpu.matmul %213, %214, %cst_94 {dimension_numbers = #tpu.dot_dimension_numbers<[1], [0], [0], [1], [0, 0, 1, 1], [], []>} : vector<16x128xbf16>, vector<128x128xbf16>, vector<16x128xf32> -> vector<16x128xf32>
    %c0_95 = arith.constant 0 : index
    %c0_96 = arith.constant 0 : index
    %216 = vector.load %arg17[%c0_95, %c0_96] : memref<1x128xf32, #tpu.memory_space<vmem>>, vector<1x128xf32>
    %217 = vector.broadcast %216 : vector<1x128xf32> to vector<16x128xf32>
    %218 = arith.addf %215, %217 : vector<16x128xf32>
    %c0_97 = arith.constant 0 : index
    %c0_98 = arith.constant 0 : index
    %219 = vector.load %arg18[%c0_97, %c0_98] : memref<128x128xf32, #tpu.memory_space<vmem>>, vector<128x128xf32>
    %220 = arith.mulf %79, %79 : vector<8x128xf32>
    %cst_99 = arith.constant dense<0.000000e+00> : vector<8xf32>
    %221 = vector.multi_reduction <add>, %220, %cst_99 [1] : vector<8x128xf32> to vector<8xf32>
    %222 = vector.shape_cast %221 : vector<8xf32> to vector<8x1xf32>
    %223 = arith.mulf %219, %219 : vector<128x128xf32>
    %cst_100 = arith.constant dense<0.000000e+00> : vector<128xf32>
    %224 = vector.multi_reduction <add>, %223, %cst_100 [0] : vector<128x128xf32> to vector<128xf32>
    %225 = vector.shape_cast %224 : vector<128xf32> to vector<1x128xf32>
    %cst_101 = arith.constant dense<0.000000e+00> : vector<8x128xf32>
    %226 = tpu.matmul %79, %219, %cst_101 {dimension_numbers = #tpu.dot_dimension_numbers<[1], [0], [0], [1], [0, 0, 1, 1], [], []>} : vector<8x128xf32>, vector<128x128xf32>, vector<8x128xf32> -> vector<8x128xf32>
    %227 = vector.broadcast %222 : vector<8x1xf32> to vector<8x128xf32>
    %228 = vector.broadcast %225 : vector<1x128xf32> to vector<8x128xf32>
    %229 = arith.addf %227, %228 : vector<8x128xf32>
    %cst_102 = arith.constant 2.000000e+00 : f32
    %230 = vector.broadcast %cst_102 : f32 to vector<8x128xf32>
    %231 = arith.mulf %230, %226 : vector<8x128xf32>
    %232 = arith.subf %229, %231 : vector<8x128xf32>
    %cst_103 = arith.constant 0.000000e+00 : f32
    %233 = vector.broadcast %cst_103 : f32 to vector<8x128xf32>
    %234 = arith.maximumf %232, %233 : vector<8x128xf32>
    %cst_104 = arith.constant 1.000000e+00 : f32
    %235 = vector.broadcast %cst_104 : f32 to vector<8x128xf32>
    %236 = arith.mulf %234, %235 : vector<8x128xf32>
    %cst_105 = arith.constant 1.000000e+00 : f32
    %237 = vector.broadcast %cst_105 : f32 to vector<8x128xf32>
    %238 = arith.addf %237, %236 : vector<8x128xf32>
    %239 = tpu.reciprocal %238 {approx = true} : vector<8x128xf32> -> vector<8x128xf32>
    %240 = tpu.iota {dimensions = array<i32: 1>} : vector<1x128xi32>
    %c4_i32 = arith.constant 4 : i32
    %241 = vector.broadcast %c4_i32 : i32 to vector<1x128xi32>
    %242 = arith.cmpi slt, %240, %241 : vector<1x128xi32>
    %cst_106 = arith.constant 0.000000e+00 : f32
    %243 = vector.shape_cast %242 : vector<1x128xi1> to vector<1x128xi1>
    %244 = vector.broadcast %243 : vector<1x128xi1> to vector<8x128xi1>
    %245 = vector.broadcast %cst_106 : f32 to vector<8x128xf32>
    %246 = arith.select %244, %239, %245 : vector<8x128xi1>, vector<8x128xf32>
    %cst_107 = arith.constant dense<0.000000e+00> : vector<8xf32>
    %247 = vector.multi_reduction <add>, %246, %cst_107 [1] : vector<8x128xf32> to vector<8xf32>
    %248 = vector.shape_cast %247 : vector<8xf32> to vector<8x1xf32>
    %249 = tpu.reciprocal %248 {approx = true} : vector<8x1xf32> -> vector<8x1xf32>
    %250 = vector.broadcast %249 : vector<8x1xf32> to vector<8x128xf32>
    %251 = arith.mulf %246, %250 : vector<8x128xf32>
    %252 = vector.extract_strided_slice %218 {offsets = [0, 0], sizes = [8, 128], strides = [1, 1]} : vector<16x128xf32> to vector<8x128xf32>
    %c0_108 = arith.constant 0 : index
    %c0_109 = arith.constant 0 : index
    %253 = vector.load %arg20[%c0_108, %c0_109] : memref<8x128xf32, #tpu.memory_space<vmem>>, vector<8x128xf32>
    tpu.vector_store %arg20[%c0_108, %c0_109], %252 {strides = array<i32>} : memref<8x128xf32, #tpu.memory_space<vmem>>, vector<8x128xf32>,
    %254 = vector.extract_strided_slice %218 {offsets = [8, 0], sizes = [8, 128], strides = [1, 1]} : vector<16x128xf32> to vector<8x128xf32>
    %c0_110 = arith.constant 0 : index
    %c0_111 = arith.constant 0 : index
    %255 = vector.load %arg19[%c0_110, %c0_111] : memref<8x128xf32, #tpu.memory_space<vmem>>, vector<8x128xf32>
    tpu.vector_store %arg19[%c0_110, %c0_111], %254 {strides = array<i32>} : memref<8x128xf32, #tpu.memory_space<vmem>>, vector<8x128xf32>,
    %c0_112 = arith.constant 0 : index
    %c0_113 = arith.constant 0 : index
    %256 = vector.load %arg21[%c0_112, %c0_113] : memref<8x128xf32, #tpu.memory_space<vmem>>, vector<8x128xf32>
    tpu.vector_store %arg21[%c0_112, %c0_113], %79 {strides = array<i32>} : memref<8x128xf32, #tpu.memory_space<vmem>>, vector<8x128xf32>,
    %c0_114 = arith.constant 0 : index
    %c0_115 = arith.constant 0 : index
    %257 = vector.load %arg22[%c0_114, %c0_115] : memref<8x128xf32, #tpu.memory_space<vmem>>, vector<8x128xf32>
    tpu.vector_store %arg22[%c0_114, %c0_115], %72 {strides = array<i32>} : memref<8x128xf32, #tpu.memory_space<vmem>>, vector<8x128xf32>,
    %c0_116 = arith.constant 0 : index
    %c0_117 = arith.constant 0 : index
    %258 = vector.load %arg23[%c0_116, %c0_117] : memref<8x128xf32, #tpu.memory_space<vmem>>, vector<8x128xf32>
    tpu.vector_store %arg23[%c0_116, %c0_117], %73 {strides = array<i32>} : memref<8x128xf32, #tpu.memory_space<vmem>>, vector<8x128xf32>,
    %c0_118 = arith.constant 0 : index
    %c0_119 = arith.constant 0 : index
    %259 = vector.load %arg24[%c0_118, %c0_119] : memref<8x128xf32, #tpu.memory_space<vmem>>, vector<8x128xf32>
    tpu.vector_store %arg24[%c0_118, %c0_119], %251 {strides = array<i32>} : memref<8x128xf32, #tpu.memory_space<vmem>>, vector<8x128xf32>,
    return
  }
}

</mosaic_0001>

<llo_original>
// kernel: tpu_custom_call.1
$region0: #{tpu_custom_call.1}
  #allocation0 [shape = 'u32[]', space=smem, size = 0x4, offset = 0x4, fixed_abs, tag = 'smem constant byte address 0x4 - core index']
  #allocation1 [shape = 'u32[144,128]{1,0:T(1,128)}', space=vmem, size = 0x12000, scoped, tag = 'internal scratch']
  %s0 = inlined_call_operand.hbm [shape: bf16[8,128], index: 0, kind: input, shape index: {}]
  %s1 = inlined_call_operand.hbm [shape: f32[8,128], index: 1, kind: input, shape index: {}]
  %s2 = inlined_call_operand.hbm [shape: bf16[128,128], index: 2, kind: input, shape index: {}]
  %s3 = inlined_call_operand.vmem [shape: f32[1,128], index: 3, kind: input, shape index: {}]
  %s4 = inlined_call_operand.vmem [shape: f32[1,128], index: 4, kind: input, shape index: {}]
  %s5 = inlined_call_operand.hbm [shape: bf16[128,128], index: 5, kind: input, shape index: {}]
  %s6 = inlined_call_operand.vmem [shape: f32[1,128], index: 6, kind: input, shape index: {}]
  %s7 = inlined_call_operand.vmem [shape: f32[1,128], index: 7, kind: input, shape index: {}]
  %s8 = inlined_call_operand.hbm [shape: bf16[128,256], index: 8, kind: input, shape index: {}]
  %s9 = inlined_call_operand.vmem [shape: f32[1,256], index: 9, kind: input, shape index: {}]
  %s10 = inlined_call_operand.hbm [shape: bf16[128,128], index: 10, kind: input, shape index: {}]
  %s11 = inlined_call_operand.vmem [shape: f32[1,128], index: 11, kind: input, shape index: {}]
  %s12 = inlined_call_operand.vmem [shape: f32[1,128], index: 12, kind: input, shape index: {}]
  %s13 = inlined_call_operand.hbm [shape: bf16[128,128], index: 13, kind: input, shape index: {}]
  %s14 = inlined_call_operand.vmem [shape: f32[1,128], index: 14, kind: input, shape index: {}]
  %s15 = inlined_call_operand.vmem [shape: f32[1,128], index: 15, kind: input, shape index: {}]
  %s16 = inlined_call_operand.hbm [shape: bf16[128,128], index: 16, kind: input, shape index: {}]
  %s17 = inlined_call_operand.vmem [shape: f32[1,128], index: 17, kind: input, shape index: {}]
  %s18 = inlined_call_operand.hbm [shape: f32[128,128], index: 18, kind: input, shape index: {}]
  %s19 = inlined_call_operand.hbm [shape: f32[8,128], index: 19, kind: output, shape index: {0}]
  %s20 = inlined_call_operand.hbm [shape: f32[8,128], index: 20, kind: output, shape index: {1}]
  %s21 = inlined_call_operand.hbm [shape: f32[8,128], index: 21, kind: output, shape index: {2}]
  %s22 = inlined_call_operand.hbm [shape: f32[8,128], index: 22, kind: output, shape index: {3}]
  %s23 = inlined_call_operand.hbm [shape: f32[8,128], index: 23, kind: output, shape index: {4}]
  %s24 = inlined_call_operand.hbm [shape: f32[8,128], index: 24, kind: output, shape index: {5}]
  %25 = xla_tuple %s19, %s20, %s21, %s22, %s23, %s24
  %s26 = sld [smem:[#allocation0]]
  $region162: #{tpu_custom_call.1} parent=0
    _
  %s28 = ssub.s32 1, %s26
  %s29 = scalar_select 0, %s28, %s26
  $region1: #{tpu_custom_call.1} parent=0
    #allocation2 [shape = 'u8[2048]{0}', space=vmem, size = 0x800, scoped, tag = 'input window, operand 0, single buffered']
    #allocation3 [shape = 's32[1]{0}', space=sflag, size = 0x4, scoped, tag = 'scoped memory for tpu_custom_call.1']
    #allocation4 [shape = 's32[1]{0}', space=sflag, size = 0x4, scoped, tag = 'scoped memory for tpu_custom_call.1']
    #allocation5 [shape = 'u8[4096]{0}', space=vmem, size = 0x1000, scoped, tag = 'input window, operand 1, single buffered']
    #allocation6 [shape = 's32[1]{0}', space=sflag, size = 0x4, scoped, tag = 'scoped memory for tpu_custom_call.1']
    #allocation7 [shape = 'u8[32768]{0}', space=vmem, size = 0x8000, scoped, tag = 'input window, operand 2, single buffered']
    #allocation8 [shape = 'u8[32768]{0}', space=vmem, size = 0x8000, scoped, tag = 'input window, operand 5, single buffered']
    #allocation9 [shape = 's32[1]{0}', space=sflag, size = 0x4, scoped, tag = 'scoped memory for tpu_custom_call.1']
    #allocation10 [shape = 'u8[65536]{0}', space=vmem, size = 0x10000, scoped, tag = 'input window, operand 8, single buffered']
    #allocation11 [shape = 'u8[32768]{0}', space=vmem, size = 0x8000, scoped, tag = 'input window, operand 10, single buffered']
    #allocation12 [shape = 's32[1]{0}', space=sflag, size = 0x4, scoped, tag = 'scoped memory for tpu_custom_call.1']
    #allocation13 [shape = 'u8[32768]{0}', space=vmem, size = 0x8000, scoped, tag = 'input window, operand 13, single buffered']
    #allocation14 [shape = 'u8[32768]{0}', space=vmem, size = 0x8000, scoped, tag = 'input window, operand 16, single buffered']
    #allocation15 [shape = 's32[1]{0}', space=sflag, size = 0x4, scoped, tag = 'scoped memory for tpu_custom_call.1']
    #allocation16 [shape = 'u8[65536]{0}', space=vmem, size = 0x10000, scoped, tag = 'input window, operand 18, single buffered']
    #allocation17 [shape = 'u8[4096]{0}', space=vmem, size = 0x1000, scoped, tag = 'output window, operand 0, single buffered']
    #allocation18 [shape = 'u8[4096]{0}', space=vmem, size = 0x1000, scoped, tag = 'output window, operand 1, single buffered']
    #allocation19 [shape = 's32[1]{0}', space=sflag, size = 0x4, scoped, tag = 'scoped memory for tpu_custom_call.1']
    #allocation20 [shape = 'u8[4096]{0}', space=vmem, size = 0x1000, scoped, tag = 'output window, operand 2, single buffered']
    #allocation21 [shape = 'u8[4096]{0}', space=vmem, size = 0x1000, scoped, tag = 'output window, operand 3, single buffered']
    #allocation22 [shape = 's32[1]{0}', space=sflag, size = 0x4, scoped, tag = 'scoped memory for tpu_custom_call.1']
    #allocation23 [shape = 'u8[4096]{0}', space=vmem, size = 0x1000, scoped, tag = 'output window, operand 4, single buffered']
    #allocation24 [shape = 'u8[4096]{0}', space=vmem, size = 0x1000, scoped, tag = 'output window, operand 5, single buffered']
    #allocation25 [shape = 's32[1]{0}', space=sflag, size = 0x4, scoped, tag = 'scoped memory for tpu_custom_call.1']
    %30 = vsyncpa [#allocation3], 0
    %31 = vsyncpa [#allocation6], 0
    %32 = vsyncpa [#allocation9], 0
    %33 = vsyncpa [#allocation12], 0
    %34 = vsyncpa [#allocation15], 0
    %35 = vsyncpa [#allocation4], 0
    %36 = vsyncpa [#allocation19], 0
    %37 = vsyncpa [#allocation22], 0
    %38 = vsyncpa [#allocation25], 0
    // Predicated region
    $region2: #{tpu_custom_call.1} parent=1 // pred_check
      _
    $region3: #{tpu_custom_call.1} parent=1 // pred_check_branch
      %40 = sbr.rel (0) target = $region5
    $region4: #{tpu_custom_call.1} parent=1 // pred_region
      %s42 = ssub.s32 64, 64
      %43 = vsyncadd [#allocation3], %s42
      %s45 = sshll.u32 [#allocation2], 4
      %s46 = int_to_ptr.vmem [resolvable:$true] %s45
      %48 = dma.hbm_to_vmem [thread:$0]  %s0, 64, %s46, [#allocation3]
    $region5: #{tpu_custom_call.1} parent=1 // pred_fallthru
      _
    // Predicated region
    $region6: #{tpu_custom_call.1} parent=1 // pred_check
      _
    $region7: #{tpu_custom_call.1} parent=1 // pred_check_branch
      %50 = sbr.rel (0) target = $region9
    $region8: #{tpu_custom_call.1} parent=1 // pred_region
      %s52 = ssub.s32 128, 128
      %53 = vsyncadd [#allocation6], %s52
      %s55 = sshll.u32 [#allocation5], 4
      %s56 = int_to_ptr.vmem [resolvable:$true] %s55
      %58 = dma.hbm_to_vmem [thread:$0]  %s1, 128, %s56, [#allocation6]
    $region9: #{tpu_custom_call.1} parent=1 // pred_fallthru
      _
    // Predicated region
    $region10: #{tpu_custom_call.1} parent=1 // pred_check
      _
    $region11: #{tpu_custom_call.1} parent=1 // pred_check_branch
      %60 = sbr.rel (0) target = $region13
    $region12: #{tpu_custom_call.1} parent=1 // pred_region
      %s62 = ssub.s32 1024, 1024
      %63 = vsyncadd [#allocation6], %s62
      %s64 = sshll.u32 [#allocation7], 4
      %s65 = int_to_ptr.vmem [resolvable:$true] %s64
      %70 = dma.hbm_to_vmem [thread:$0]  %s2, 1024, %s65, [#allocation6], 64, 64, 4
    $region13: #{tpu_custom_call.1} parent=1 // pred_fallthru
      _
    // Predicated region
    $region14: #{tpu_custom_call.1} parent=1 // pred_check
      _
    $region15: #{tpu_custom_call.1} parent=1 // pred_check_branch
      %72 = sbr.rel (0) target = $region17
    $region16: #{tpu_custom_call.1} parent=1 // pred_region
      _
    $region17: #{tpu_custom_call.1} parent=1 // pred_fallthru
      _
    // Predicated region
    $region18: #{tpu_custom_call.1} parent=1 // pred_check
      _
    $region19: #{tpu_custom_call.1} parent=1 // pred_check_branch
      %74 = sbr.rel (0) target = $region21
    $region20: #{tpu_custom_call.1} parent=1 // pred_region
      _
    $region21: #{tpu_custom_call.1} parent=1 // pred_fallthru
      _
    // Predicated region
    $region22: #{tpu_custom_call.1} parent=1 // pred_check
      _
    $region23: #{tpu_custom_call.1} parent=1 // pred_check_branch
      %76 = sbr.rel (0) target = $region25
    $region24: #{tpu_custom_call.1} parent=1 // pred_region
      %s78 = ssub.s32 1024, 1024
      %79 = vsyncadd [#allocation9], %s78
      %s80 = sshll.u32 [#allocation8], 4
      %s81 = int_to_ptr.vmem [resolvable:$true] %s80
      %86 = dma.hbm_to_vmem [thread:$0]  %s5, 1024, %s81, [#allocation9], 64, 64, 4
    $region25: #{tpu_custom_call.1} parent=1 // pred_fallthru
      _
    // Predicated region
    $region26: #{tpu_custom_call.1} parent=1 // pred_check
      _
    $region27: #{tpu_custom_call.1} parent=1 // pred_check_branch
      %88 = sbr.rel (0) target = $region29
    $region28: #{tpu_custom_call.1} parent=1 // pred_region
      _
    $region29: #{tpu_custom_call.1} parent=1 // pred_fallthru
      _
    // Predicated region
    $region30: #{tpu_custom_call.1} parent=1 // pred_check
      _
    $region31: #{tpu_custom_call.1} parent=1 // pred_check_branch
      %90 = sbr.rel (0) target = $region33
    $region32: #{tpu_custom_call.1} parent=1 // pred_region
      _
    $region33: #{tpu_custom_call.1} parent=1 // pred_fallthru
      _
    // Predicated region
    $region34: #{tpu_custom_call.1} parent=1 // pred_check
      _
    $region35: #{tpu_custom_call.1} parent=1 // pred_check_branch
      %92 = sbr.rel (0) target = $region37
    $region36: #{tpu_custom_call.1} parent=1 // pred_region
      %s94 = ssub.s32 2048, 2048
      %95 = vsyncadd [#allocation9], %s94
      %s96 = sshll.u32 [#allocation10], 4
      %s97 = int_to_ptr.vmem [resolvable:$true] %s96
      %102 = dma.hbm_to_vmem [thread:$0]  %s8, 2048, %s97, [#allocation9], 128, 128, 8
    $region37: #{tpu_custom_call.1} parent=1 // pred_fallthru
      _
    // Predicated region
    $region38: #{tpu_custom_call.1} parent=1 // pred_check
      _
    $region39: #{tpu_custom_call.1} parent=1 // pred_check_branch
      %104 = sbr.rel (0) target = $region41
    $region40: #{tpu_custom_call.1} parent=1 // pred_region
      _
    $region41: #{tpu_custom_call.1} parent=1 // pred_fallthru
      _
    // Predicated region
    $region42: #{tpu_custom_call.1} parent=1 // pred_check
      _
    $region43: #{tpu_custom_call.1} parent=1 // pred_check_branch
      %106 = sbr.rel (0) target = $region45
    $region44: #{tpu_custom_call.1} parent=1 // pred_region
      %s108 = ssub.s32 1024, 1024
      %109 = vsyncadd [#allocation12], %s108
      %s110 = sshll.u32 [#allocation11], 4
      %s111 = int_to_ptr.vmem [resolvable:$true] %s110
      %116 = dma.hbm_to_vmem [thread:$0]  %s10, 1024, %s111, [#allocation12], 64, 64, 4
    $region45: #{tpu_custom_call.1} parent=1 // pred_fallthru
      _
    // Predicated region
    $region46: #{tpu_custom_call.1} parent=1 // pred_check
      _
    $region47: #{tpu_custom_call.1} parent=1 // pred_check_branch
      %118 = sbr.rel (0) target = $region49
    $region48: #{tpu_custom_call.1} parent=1 // pred_region
      _
    $region49: #{tpu_custom_call.1} parent=1 // pred_fallthru
      _
    // Predicated region
    $region50: #{tpu_custom_call.1} parent=1 // pred_check
      _
    $region51: #{tpu_custom_call.1} parent=1 // pred_check_branch
      %120 = sbr.rel (0) target = $region53
    $region52: #{tpu_custom_call.1} parent=1 // pred_region
      _
    $region53: #{tpu_custom_call.1} parent=1 // pred_fallthru
      _
    // Predicated region
    $region54: #{tpu_custom_call.1} parent=1 // pred_check
      _
    $region55: #{tpu_custom_call.1} parent=1 // pred_check_branch
      %122 = sbr.rel (0) target = $region57
    $region56: #{tpu_custom_call.1} parent=1 // pred_region
      %s124 = ssub.s32 1024, 1024
      %125 = vsyncadd [#allocation12], %s124
      %s126 = sshll.u32 [#allocation13], 4
      %s127 = int_to_ptr.vmem [resolvable:$true] %s126
      %132 = dma.hbm_to_vmem [thread:$0]  %s13, 1024, %s127, [#allocation12], 64, 64, 4
    $region57: #{tpu_custom_call.1} parent=1 // pred_fallthru
      _
    // Predicated region
    $region58: #{tpu_custom_call.1} parent=1 // pred_check
      _
    $region59: #{tpu_custom_call.1} parent=1 // pred_check_branch
      %134 = sbr.rel (0) target = $region61
    $region60: #{tpu_custom_call.1} parent=1 // pred_region
      _
    $region61: #{tpu_custom_call.1} parent=1 // pred_fallthru
      _
    // Predicated region
    $region62: #{tpu_custom_call.1} parent=1 // pred_check
      _
    $region63: #{tpu_custom_call.1} parent=1 // pred_check_branch
      %136 = sbr.rel (0) target = $region65
    $region64: #{tpu_custom_call.1} parent=1 // pred_region
      _
    $region65: #{tpu_custom_call.1} parent=1 // pred_fallthru
      _
    // Predicated region
    $region66: #{tpu_custom_call.1} parent=1 // pred_check
      _
    $region67: #{tpu_custom_call.1} parent=1 // pred_check_branch
      %138 = sbr.rel (0) target = $region69
    $region68: #{tpu_custom_call.1} parent=1 // pred_region
      %s140 = ssub.s32 1024, 1024
      %141 = vsyncadd [#allocation15], %s140
      %s142 = sshll.u32 [#allocation14], 4
      %s143 = int_to_ptr.vmem [resolvable:$true] %s142
      %148 = dma.hbm_to_vmem [thread:$0]  %s16, 1024, %s143, [#allocation15], 64, 64, 4
    $region69: #{tpu_custom_call.1} parent=1 // pred_fallthru
      _
    // Predicated region
    $region70: #{tpu_custom_call.1} parent=1 // pred_check
      _
    $region71: #{tpu_custom_call.1} parent=1 // pred_check_branch
      %150 = sbr.rel (0) target = $region73
    $region72: #{tpu_custom_call.1} parent=1 // pred_region
      _
    $region73: #{tpu_custom_call.1} parent=1 // pred_fallthru
      _
    // Predicated region
    $region74: #{tpu_custom_call.1} parent=1 // pred_check
      _
    $region75: #{tpu_custom_call.1} parent=1 // pred_check_branch
      %152 = sbr.rel (0) target = $region77
    $region76: #{tpu_custom_call.1} parent=1 // pred_region
      %s154 = ssub.s32 2048, 2048
      %155 = vsyncadd [#allocation15], %s154
      %s156 = sshll.u32 [#allocation16], 4
      %s157 = int_to_ptr.vmem [resolvable:$true] %s156
      %162 = dma.hbm_to_vmem [thread:$0]  %s18, 2048, %s157, [#allocation15], 128, 128, 8
    $region77: #{tpu_custom_call.1} parent=1 // pred_fallthru
      _
    // Predicated region
    $region78: #{tpu_custom_call.1} parent=1 // pred_check
      _
    $region79: #{tpu_custom_call.1} parent=1 // pred_check_branch
      %164 = sbr.rel (0) target = $region81
    $region80: #{tpu_custom_call.1} parent=1 // pred_region
      %165 = dma.done [#allocation3], 64
    $region81: #{tpu_custom_call.1} parent=1 // pred_fallthru
      _
    // Predicated region
    $region82: #{tpu_custom_call.1} parent=1 // pred_check
      _
    $region83: #{tpu_custom_call.1} parent=1 // pred_check_branch
      %167 = sbr.rel (0) target = $region85
    $region84: #{tpu_custom_call.1} parent=1 // pred_region
      %168 = dma.done [#allocation6], 128
    $region85: #{tpu_custom_call.1} parent=1 // pred_fallthru
      _
    // Predicated region
    $region86: #{tpu_custom_call.1} parent=1 // pred_check
      _
    $region87: #{tpu_custom_call.1} parent=1 // pred_check_branch
      %170 = sbr.rel (0) target = $region89
    $region88: #{tpu_custom_call.1} parent=1 // pred_region
      %171 = dma.done [#allocation6], 1024
    $region89: #{tpu_custom_call.1} parent=1 // pred_fallthru
      _
    // Predicated region
    $region90: #{tpu_custom_call.1} parent=1 // pred_check
      _
    $region91: #{tpu_custom_call.1} parent=1 // pred_check_branch
      %173 = sbr.rel (0) target = $region93
    $region92: #{tpu_custom_call.1} parent=1 // pred_region
      %174 = dma.done [#allocation9], 1024
    $region93: #{tpu_custom_call.1} parent=1 // pred_fallthru
      _
    // Predicated region
    $region94: #{tpu_custom_call.1} parent=1 // pred_check
      _
    $region95: #{tpu_custom_call.1} parent=1 // pred_check_branch
      %176 = sbr.rel (0) target = $region97
    $region96: #{tpu_custom_call.1} parent=1 // pred_region
      %177 = dma.done [#allocation9], 2048
    $region97: #{tpu_custom_call.1} parent=1 // pred_fallthru
      _
    // Predicated region
    $region98: #{tpu_custom_call.1} parent=1 // pred_check
      _
    $region99: #{tpu_custom_call.1} parent=1 // pred_check_branch
      %179 = sbr.rel (0) target = $region101
    $region100: #{tpu_custom_call.1} parent=1 // pred_region
      %180 = dma.done [#allocation12], 1024
    $region101: #{tpu_custom_call.1} parent=1 // pred_fallthru
      _
    // Predicated region
    $region102: #{tpu_custom_call.1} parent=1 // pred_check
      _
    $region103: #{tpu_custom_call.1} parent=1 // pred_check_branch
      %182 = sbr.rel (0) target = $region105
    $region104: #{tpu_custom_call.1} parent=1 // pred_region
      %183 = dma.done [#allocation12], 1024
    $region105: #{tpu_custom_call.1} parent=1 // pred_fallthru
      _
    // Predicated region
    $region106: #{tpu_custom_call.1} parent=1 // pred_check
      _
    $region107: #{tpu_custom_call.1} parent=1 // pred_check_branch
      %185 = sbr.rel (0) target = $region109
    $region108: #{tpu_custom_call.1} parent=1 // pred_region
      %186 = dma.done [#allocation15], 1024
    $region109: #{tpu_custom_call.1} parent=1 // pred_fallthru
      _
    // Predicated region
    $region110: #{tpu_custom_call.1} parent=1 // pred_check
      _
    $region111: #{tpu_custom_call.1} parent=1 // pred_check_branch
      %188 = sbr.rel (0) target = $region113
    $region112: #{tpu_custom_call.1} parent=1 // pred_region
      %189 = dma.done [#allocation15], 2048
    $region113: #{tpu_custom_call.1} parent=1 // pred_fallthru
      _
    %v191 = vld [vmem:[#allocation2] sm:$0xf]
    %v192 = vld [vmem:[#allocation7] sm:$0xf]
    %v193 = vld [vmem:[#allocation7 + $0x4] sm:$0xf]
    %v194 = vld [vmem:[#allocation7 + $0x8] sm:$0xf]
    %v195 = vld [vmem:[#allocation7 + $0xc] sm:$0xf]
    %v196 = vld [vmem:[#allocation7 + $0x10] sm:$0xf]
    %v197 = vld [vmem:[#allocation7 + $0x14] sm:$0xf]
    %v198 = vld [vmem:[#allocation7 + $0x18] sm:$0xf]
    %v199 = vld [vmem:[#allocation7 + $0x1c] sm:$0xf]
    %v200 = vld [vmem:[#allocation7 + $0x20] sm:$0xf]
    %v201 = vld [vmem:[#allocation7 + $0x24] sm:$0xf]
    %v202 = vld [vmem:[#allocation7 + $0x28] sm:$0xf]
    %v203 = vld [vmem:[#allocation7 + $0x2c] sm:$0xf]
    %v204 = vld [vmem:[#allocation7 + $0x30] sm:$0xf]
    %v205 = vld [vmem:[#allocation7 + $0x34] sm:$0xf]
    %v206 = vld [vmem:[#allocation7 + $0x38] sm:$0xf]
    %v207 = vld [vmem:[#allocation7 + $0x3c] sm:$0xf]
    %v224 = vunpack.c.l.b16 %v192
    %v225 = vunpack.c.l.b16 %v193
    %v226 = vunpack.c.l.b16 %v194
    %v227 = vunpack.c.l.b16 %v195
    %v228 = vunpack.c.l.b16 %v196
    %v229 = vunpack.c.l.b16 %v197
    %v230 = vunpack.c.l.b16 %v198
    %v231 = vunpack.c.l.b16 %v199
    %v232 = vunpack.c.l.b16 %v200
    %v233 = vunpack.c.l.b16 %v201
    %v234 = vunpack.c.l.b16 %v202
    %v235 = vunpack.c.l.b16 %v203
    %v236 = vunpack.c.l.b16 %v204
    %v237 = vunpack.c.l.b16 %v205
    %v238 = vunpack.c.l.b16 %v206
    %v239 = vunpack.c.l.b16 %v207
    %v240 = vpack.c.b16 %v225, %v224
    %v241 = vpack.c.b16 %v227, %v226
    %v242 = vpack.c.b16 %v229, %v228
    %v243 = vpack.c.b16 %v231, %v230
    %v244 = vpack.c.b16 %v233, %v232
    %v245 = vpack.c.b16 %v235, %v234
    %v246 = vpack.c.b16 %v237, %v236
    %v247 = vpack.c.b16 %v239, %v238
    %256 = vmatprep.subr.bf16.mxu0 0
    %257 = vmatpush1.bf16.msra.mxu0 %v247
    %258 = vmatprep.subr.bf16.mxu0 0
    %259 = vmatpush1.bf16.msra.mxu0 %v246
    %260 = vmatprep.subr.bf16.mxu0 0
    %261 = vmatpush1.bf16.msra.mxu0 %v245
    %262 = vmatprep.subr.bf16.mxu0 0
    %263 = vmatpush1.bf16.msra.mxu0 %v244
    %264 = vmatprep.subr.bf16.mxu0 0
    %265 = vmatpush1.bf16.msra.mxu0 %v243
    %266 = vmatprep.subr.bf16.mxu0 0
    %267 = vmatpush1.bf16.msra.mxu0 %v242
    %268 = vmatprep.subr.bf16.mxu0 0
    %269 = vmatpush1.bf16.msra.mxu0 %v241
    %270 = vmatprep.subr.bf16.mxu0 0
    %271 = vmatpush1.bf16.msra.mxu0 %v240
    %272 = vmatprep.subr.bf16.mxu0 0
    %273 = vmatpush2.bf16.msra.mxu0 0
    %274 = vmatprep.subr.bf16.mxu0 0
    %275 = vmatpush2.bf16.msra.mxu0 0
    %276 = vmatprep.subr.bf16.mxu0 0
    %277 = vmatpush2.bf16.msra.mxu0 0
    %278 = vmatprep.subr.bf16.mxu0 0
    %279 = vmatpush2.bf16.msra.mxu0 0
    %280 = vmatprep.subr.bf16.mxu0 0
    %281 = vmatpush2.bf16.msra.mxu0 0
    %282 = vmatprep.subr.bf16.mxu0 0
    %283 = vmatpush2.bf16.msra.mxu0 0
    %284 = vmatprep.subr.bf16.mxu0 0
    %285 = vmatpush2.bf16.msra.mxu0 0
    %286 = vmatprep.subr.bf16.mxu0 0
    %287 = vmatpush2.bf16.msra.mxu0 0
    %288 = vmatprep.mubr.bf16.mxu0 0
    %289 = vmatmul.mubr.bf16.gmra.mxu0 %v191
    %v290 = vpop.f32.mrf.mxu0
    %v291 = vadd.f32 0.0, %v290
    %v292 = vpop.f32.mrf.mxu0
    %v293 = vpop.f32.mrf.mxu0
    %v294 = vpop.f32.mrf.mxu0
    %295 = vdwg.mxu0
    %v296 = vrot.slane %v291, 4
    %v297 = vadd.f32 %v291, %v296
    %v298 = vrot.slane %v297, 2
    %v299 = vadd.f32 %v297, %v298
    %v300 = vrot.slane %v299, 1
    %v301 = vadd.f32 %v299, %v300
    %v302 = vrcp.pop 8.0
    %v303 = vmul.f32 %v301, %v302
    %v304 = vmul.f32 %v291, %v291
    %v305 = vrot.slane %v304, 4
    %v306 = vadd.f32 %v304, %v305
    %v307 = vrot.slane %v306, 2
    %v308 = vadd.f32 %v306, %v307
    %v309 = vrot.slane %v308, 1
    %v310 = vadd.f32 %v308, %v309
    %v311 = vmul.f32 %v310, %v302
    %v312 = vmul.f32 %v303, %v303
    %v313 = vsub.f32 %v311, %v312
    %v314 = vmax.f32 %v313, 0.0
    %v315 = vld [vmem:[%s3] sm:$0x1]
    %v316 = vadd.f32 %v314, 1e-05
    %v317 = vrsqrt.pop %v316
    %v318 = vmul.f32 %v315, %v317
    %v319 = vld [vmem:[%s4] sm:$0x1]
    %v320 = vmul.f32 %v303, %v318
    %v321 = vsub.f32 %v319, %v320
    %v323 = vlaneseq
    %v324 = vshrl.u32 %v323, 7
    %v325 = vsub.s32 0, %v324
    %v326 = vrot.slane %v318, %v325
    %v328 = vmul.f32 %v291, %v326
    %v330 = vlaneseq
    %v331 = vshrl.u32 %v330, 7
    %v332 = vsub.s32 0, %v331
    %v333 = vrot.slane %v321, %v332
    %v335 = vadd.f32 %v328, %v333
    %vm336 = vcmp.gt.f32.partialorder %v335, 0.0
    %v337 = vmul.f32 %v335, 0.1
    %v338 = vsel %vm336, %v335, %v337
    %v339 = vpack.c.bf16 %v338, %v338
    %v340 = vld [vmem:[#allocation8] sm:$0xf]
    %v341 = vld [vmem:[#allocation8 + $0x4] sm:$0xf]
    %v342 = vld [vmem:[#allocation8 + $0x8] sm:$0xf]
    %v343 = vld [vmem:[#allocation8 + $0xc] sm:$0xf]
    %v344 = vld [vmem:[#allocation8 + $0x10] sm:$0xf]
    %v345 = vld [vmem:[#allocation8 + $0x14] sm:$0xf]
    %v346 = vld [vmem:[#allocation8 + $0x18] sm:$0xf]
    %v347 = vld [vmem:[#allocation8 + $0x1c] sm:$0xf]
    %v348 = vld [vmem:[#allocation8 + $0x20] sm:$0xf]
    %v349 = vld [vmem:[#allocation8 + $0x24] sm:$0xf]
    %v350 = vld [vmem:[#allocation8 + $0x28] sm:$0xf]
    %v351 = vld [vmem:[#allocation8 + $0x2c] sm:$0xf]
    %v352 = vld [vmem:[#allocation8 + $0x30] sm:$0xf]
    %v353 = vld [vmem:[#allocation8 + $0x34] sm:$0xf]
    %v354 = vld [vmem:[#allocation8 + $0x38] sm:$0xf]
    %v355 = vld [vmem:[#allocation8 + $0x3c] sm:$0xf]
    %v372 = vunpack.c.l.b16 %v340
    %v373 = vunpack.c.l.b16 %v341
    %v374 = vunpack.c.l.b16 %v342
    %v375 = vunpack.c.l.b16 %v343
    %v376 = vunpack.c.l.b16 %v344
    %v377 = vunpack.c.l.b16 %v345
    %v378 = vunpack.c.l.b16 %v346
    %v379 = vunpack.c.l.b16 %v347
    %v380 = vunpack.c.l.b16 %v348
    %v381 = vunpack.c.l.b16 %v349
    %v382 = vunpack.c.l.b16 %v350
    %v383 = vunpack.c.l.b16 %v351
    %v384 = vunpack.c.l.b16 %v352
    %v385 = vunpack.c.l.b16 %v353
    %v386 = vunpack.c.l.b16 %v354
    %v387 = vunpack.c.l.b16 %v355
    %v388 = vpack.c.b16 %v373, %v372
    %v389 = vpack.c.b16 %v375, %v374
    %v390 = vpack.c.b16 %v377, %v376
    %v391 = vpack.c.b16 %v379, %v378
    %v392 = vpack.c.b16 %v381, %v380
    %v393 = vpack.c.b16 %v383, %v382
    %v394 = vpack.c.b16 %v385, %v384
    %v395 = vpack.c.b16 %v387, %v386
    %404 = vmatprep.subr.bf16.mxu0 0
    %405 = vmatpush1.bf16.msra.mxu0 %v395
    %406 = vmatprep.subr.bf16.mxu0 0
    %407 = vmatpush1.bf16.msra.mxu0 %v394
    %408 = vmatprep.subr.bf16.mxu0 0
    %409 = vmatpush1.bf16.msra.mxu0 %v393
    %410 = vmatprep.subr.bf16.mxu0 0
    %411 = vmatpush1.bf16.msra.mxu0 %v392
    %412 = vmatprep.subr.bf16.mxu0 0
    %413 = vmatpush1.bf16.msra.mxu0 %v391
    %414 = vmatprep.subr.bf16.mxu0 0
    %415 = vmatpush1.bf16.msra.mxu0 %v390
    %416 = vmatprep.subr.bf16.mxu0 0
    %417 = vmatpush1.bf16.msra.mxu0 %v389
    %418 = vmatprep.subr.bf16.mxu0 0
    %419 = vmatpush1.bf16.msra.mxu0 %v388
    %420 = vmatprep.subr.bf16.mxu0 0
    %421 = vmatpush2.bf16.msra.mxu0 0
    %422 = vmatprep.subr.bf16.mxu0 0
    %423 = vmatpush2.bf16.msra.mxu0 0
    %424 = vmatprep.subr.bf16.mxu0 0
    %425 = vmatpush2.bf16.msra.mxu0 0
    %426 = vmatprep.subr.bf16.mxu0 0
    %427 = vmatpush2.bf16.msra.mxu0 0
    %428 = vmatprep.subr.bf16.mxu0 0
    %429 = vmatpush2.bf16.msra.mxu0 0
    %430 = vmatprep.subr.bf16.mxu0 0
    %431 = vmatpush2.bf16.msra.mxu0 0
    %432 = vmatprep.subr.bf16.mxu0 0
    %433 = vmatpush2.bf16.msra.mxu0 0
    %434 = vmatprep.subr.bf16.mxu0 0
    %435 = vmatpush2.bf16.msra.mxu0 0
    %436 = vmatprep.mubr.bf16.mxu0 0
    %437 = vmatmul.mubr.bf16.gmra.mxu0 %v339
    %v438 = vpop.f32.mrf.mxu0
    %v439 = vadd.f32 0.0, %v438
    %v440 = vpop.f32.mrf.mxu0
    %v441 = vpop.f32.mrf.mxu0
    %v442 = vpop.f32.mrf.mxu0
    %443 = vdwg.mxu0
    %v444 = vrot.slane %v439, 4
    %v445 = vadd.f32 %v439, %v444
    %v446 = vrot.slane %v445, 2
    %v447 = vadd.f32 %v445, %v446
    %v448 = vrot.slane %v447, 1
    %v449 = vadd.f32 %v447, %v448
    %v450 = vmul.f32 %v449, %v302
    %v451 = vmul.f32 %v439, %v439
    %v452 = vrot.slane %v451, 4
    %v453 = vadd.f32 %v451, %v452
    %v454 = vrot.slane %v453, 2
    %v455 = vadd.f32 %v453, %v454
    %v456 = vrot.slane %v455, 1
    %v457 = vadd.f32 %v455, %v456
    %v458 = vmul.f32 %v457, %v302
    %v459 = vmul.f32 %v450, %v450
    %v460 = vsub.f32 %v458, %v459
    %v461 = vmax.f32 %v460, 0.0
    %v462 = vld [vmem:[%s6] sm:$0x1]
    %v463 = vadd.f32 %v461, 1e-05
    %v464 = vrsqrt.pop %v463
    %v465 = vmul.f32 %v462, %v464
    %v466 = vld [vmem:[%s7] sm:$0x1]
    %v467 = vmul.f32 %v450, %v465
    %v468 = vsub.f32 %v466, %v467
    %v470 = vlaneseq
    %v471 = vshrl.u32 %v470, 7
    %v472 = vsub.s32 0, %v471
    %v473 = vrot.slane %v465, %v472
    %v475 = vmul.f32 %v439, %v473
    %v477 = vlaneseq
    %v478 = vshrl.u32 %v477, 7
    %v479 = vsub.s32 0, %v478
    %v480 = vrot.slane %v468, %v479
    %v482 = vadd.f32 %v475, %v480
    %vm483 = vcmp.gt.f32.partialorder %v482, 0.0
    %v484 = vmul.f32 %v482, 0.1
    %v485 = vsel %vm483, %v482, %v484
    %v486 = vpack.c.bf16 %v485, %v485
    %v487 = vld [vmem:[#allocation10] sm:$0xff]
    %v488 = vld [vmem:[#allocation10 + $0x8] sm:$0xff]
    %v489 = vld [vmem:[#allocation10 + $0x10] sm:$0xff]
    %v490 = vld [vmem:[#allocation10 + $0x18] sm:$0xff]
    %v491 = vld [vmem:[#allocation10 + $0x20] sm:$0xff]
    %v492 = vld [vmem:[#allocation10 + $0x28] sm:$0xff]
    %v493 = vld [vmem:[#allocation10 + $0x30] sm:$0xff]
    %v494 = vld [vmem:[#allocation10 + $0x38] sm:$0xff]
    %v495 = vld [vmem:[#allocation10 + $0x40] sm:$0xff]
    %v496 = vld [vmem:[#allocation10 + $0x48] sm:$0xff]
    %v497 = vld [vmem:[#allocation10 + $0x50] sm:$0xff]
    %v498 = vld [vmem:[#allocation10 + $0x58] sm:$0xff]
    %v499 = vld [vmem:[#allocation10 + $0x60] sm:$0xff]
    %v500 = vld [vmem:[#allocation10 + $0x68] sm:$0xff]
    %v501 = vld [vmem:[#allocation10 + $0x70] sm:$0xff]
    %v502 = vld [vmem:[#allocation10 + $0x78] sm:$0xff]
    %v503 = vld [vmem:[%s9] sm:$0x3]
    %v505 = vlaneseq
    %v506 = vshrl.u32 %v505, 7
    %v507 = vsub.s32 0, %v506
    %v508 = vrot.slane %v503, %v507
    %v509 = vlaneseq
    %v510 = vshrl.u32 %v509, 7
    %v511 = vsub.s32 1, %v510
    %v512 = vrot.slane %v503, %v511
    %v531 = vunpack.c.l.b16 %v487
    %v532 = vunpack.c.h.b16 %v487
    %v533 = vunpack.c.l.b16 %v488
    %v534 = vunpack.c.h.b16 %v488
    %v535 = vunpack.c.l.b16 %v489
    %v536 = vunpack.c.h.b16 %v489
    %v537 = vunpack.c.l.b16 %v490
    %v538 = vunpack.c.h.b16 %v490
    %v539 = vunpack.c.l.b16 %v491
    %v540 = vunpack.c.h.b16 %v491
    %v541 = vunpack.c.l.b16 %v492
    %v542 = vunpack.c.h.b16 %v492
    %v543 = vunpack.c.l.b16 %v493
    %v544 = vunpack.c.h.b16 %v493
    %v545 = vunpack.c.l.b16 %v494
    %v546 = vunpack.c.h.b16 %v494
    %v547 = vunpack.c.l.b16 %v495
    %v548 = vunpack.c.h.b16 %v495
    %v549 = vunpack.c.l.b16 %v496
    %v550 = vunpack.c.h.b16 %v496
    %v551 = vunpack.c.l.b16 %v497
    %v552 = vunpack.c.h.b16 %v497
    %v553 = vunpack.c.l.b16 %v498
    %v554 = vunpack.c.h.b16 %v498
    %v555 = vunpack.c.l.b16 %v499
    %v556 = vunpack.c.h.b16 %v499
    %v557 = vunpack.c.l.b16 %v500
    %v558 = vunpack.c.h.b16 %v500
    %v559 = vunpack.c.l.b16 %v501
    %v560 = vunpack.c.h.b16 %v501
    %v561 = vunpack.c.l.b16 %v502
    %v562 = vunpack.c.h.b16 %v502
    %v563 = vpack.c.b16 %v533, %v531
    %v564 = vpack.c.b16 %v534, %v532
    %v565 = vpack.c.b16 %v537, %v535
    %v566 = vpack.c.b16 %v538, %v536
    %v567 = vpack.c.b16 %v541, %v539
    %v568 = vpack.c.b16 %v542, %v540
    %v569 = vpack.c.b16 %v545, %v543
    %v570 = vpack.c.b16 %v546, %v544
    %v571 = vpack.c.b16 %v549, %v547
    %v572 = vpack.c.b16 %v550, %v548
    %v573 = vpack.c.b16 %v553, %v551
    %v574 = vpack.c.b16 %v554, %v552
    %v575 = vpack.c.b16 %v557, %v555
    %v576 = vpack.c.b16 %v558, %v556
    %v577 = vpack.c.b16 %v561, %v559
    %v578 = vpack.c.b16 %v562, %v560
    %595 = vmatprep.subr.bf16.mxu0 %v578
    %596 = vmatpush1.bf16.msra.mxu0 %v577
    %597 = vmatprep.subr.bf16.mxu0 %v576
    %598 = vmatpush1.bf16.msra.mxu0 %v575
    %599 = vmatprep.subr.bf16.mxu0 %v574
    %600 = vmatpush1.bf16.msra.mxu0 %v573
    %601 = vmatprep.subr.bf16.mxu0 %v572
    %602 = vmatpush1.bf16.msra.mxu0 %v571
    %603 = vmatprep.subr.bf16.mxu0 %v570
    %604 = vmatpush1.bf16.msra.mxu0 %v569
    %605 = vmatprep.subr.bf16.mxu0 %v568
    %606 = vmatpush1.bf16.msra.mxu0 %v567
    %607 = vmatprep.subr.bf16.mxu0 %v566
    %608 = vmatpush1.bf16.msra.mxu0 %v565
    %609 = vmatprep.subr.bf16.mxu0 %v564
    %610 = vmatpush1.bf16.msra.mxu0 %v563
    %611 = vmatprep.subr.bf16.mxu0 0
    %612 = vmatpush2.bf16.msra.mxu0 0
    %613 = vmatprep.subr.bf16.mxu0 0
    %614 = vmatpush2.bf16.msra.mxu0 0
    %615 = vmatprep.subr.bf16.mxu0 0
    %616 = vmatpush2.bf16.msra.mxu0 0
    %617 = vmatprep.subr.bf16.mxu0 0
    %618 = vmatpush2.bf16.msra.mxu0 0
    %619 = vmatprep.subr.bf16.mxu0 0
    %620 = vmatpush2.bf16.msra.mxu0 0
    %621 = vmatprep.subr.bf16.mxu0 0
    %622 = vmatpush2.bf16.msra.mxu0 0
    %623 = vmatprep.subr.bf16.mxu0 0
    %624 = vmatpush2.bf16.msra.mxu0 0
    %625 = vmatprep.subr.bf16.mxu0 0
    %626 = vmatpush2.bf16.msra.mxu0 0
    %627 = vmatprep.mubr.bf16.mxu0 0
    %628 = vmatmul.mubr.bf16.gmra.mxu0 %v486
    %v629 = vpop.f32.mrf.mxu0
    %v630 = vadd.f32 %v508, %v629
    %v631 = vpop.f32.mrf.mxu0
    %v632 = vadd.f32 %v512, %v631
    %v633 = vpop.f32.mrf.mxu0
    %v634 = vpop.f32.mrf.mxu0
    %635 = vdwg.mxu0
    %v636 = vld [vmem:[#allocation5] sm:$0xff]
    %v637 = vmul.f32 %v632, 0.5
    %v638 = vmul.f32 %v637, 1.442695
    %v639 = vpow.pop %v638
    %v640 = vmul.f32 %v636, %v639
    %v641 = vadd.f32 %v640, %v630
    %v642 = vpack.c.bf16 %v641, %v630
    %v643 = vld [vmem:[#allocation11] sm:$0xf]
    %v644 = vld [vmem:[#allocation11 + $0x4] sm:$0xf]
    %v645 = vld [vmem:[#allocation11 + $0x8] sm:$0xf]
    %v646 = vld [vmem:[#allocation11 + $0xc] sm:$0xf]
    %v647 = vld [vmem:[#allocation11 + $0x10] sm:$0xf]
    %v648 = vld [vmem:[#allocation11 + $0x14] sm:$0xf]
    %v649 = vld [vmem:[#allocation11 + $0x18] sm:$0xf]
    %v650 = vld [vmem:[#allocation11 + $0x1c] sm:$0xf]
    %v651 = vld [vmem:[#allocation11 + $0x20] sm:$0xf]
    %v652 = vld [vmem:[#allocation11 + $0x24] sm:$0xf]
    %v653 = vld [vmem:[#allocation11 + $0x28] sm:$0xf]
    %v654 = vld [vmem:[#allocation11 + $0x2c] sm:$0xf]
    %v655 = vld [vmem:[#allocation11 + $0x30] sm:$0xf]
    %v656 = vld [vmem:[#allocation11 + $0x34] sm:$0xf]
    %v657 = vld [vmem:[#allocation11 + $0x38] sm:$0xf]
    %v658 = vld [vmem:[#allocation11 + $0x3c] sm:$0xf]
    %v675 = vunpack.c.l.b16 %v643
    %v676 = vunpack.c.l.b16 %v644
    %v677 = vunpack.c.l.b16 %v645
    %v678 = vunpack.c.l.b16 %v646
    %v679 = vunpack.c.l.b16 %v647
    %v680 = vunpack.c.l.b16 %v648
    %v681 = vunpack.c.l.b16 %v649
    %v682 = vunpack.c.l.b16 %v650
    %v683 = vunpack.c.l.b16 %v651
    %v684 = vunpack.c.l.b16 %v652
    %v685 = vunpack.c.l.b16 %v653
    %v686 = vunpack.c.l.b16 %v654
    %v687 = vunpack.c.l.b16 %v655
    %v688 = vunpack.c.l.b16 %v656
    %v689 = vunpack.c.l.b16 %v657
    %v690 = vunpack.c.l.b16 %v658
    %v691 = vpack.c.b16 %v676, %v675
    %v692 = vpack.c.b16 %v678, %v677
    %v693 = vpack.c.b16 %v680, %v679
    %v694 = vpack.c.b16 %v682, %v681
    %v695 = vpack.c.b16 %v684, %v683
    %v696 = vpack.c.b16 %v686, %v685
    %v697 = vpack.c.b16 %v688, %v687
    %v698 = vpack.c.b16 %v690, %v689
    %707 = vmatprep.subr.bf16.mxu0 0
    %708 = vmatpush1.bf16.msra.mxu0 %v698
    %709 = vmatprep.subr.bf16.mxu0 0
    %710 = vmatpush1.bf16.msra.mxu0 %v697
    %711 = vmatprep.subr.bf16.mxu0 0
    %712 = vmatpush1.bf16.msra.mxu0 %v696
    %713 = vmatprep.subr.bf16.mxu0 0
    %714 = vmatpush1.bf16.msra.mxu0 %v695
    %715 = vmatprep.subr.bf16.mxu0 0
    %716 = vmatpush1.bf16.msra.mxu0 %v694
    %717 = vmatprep.subr.bf16.mxu0 0
    %718 = vmatpush1.bf16.msra.mxu0 %v693
    %719 = vmatprep.subr.bf16.mxu0 0
    %720 = vmatpush1.bf16.msra.mxu0 %v692
    %721 = vmatprep.subr.bf16.mxu0 0
    %722 = vmatpush1.bf16.msra.mxu0 %v691
    %723 = vmatprep.subr.bf16.mxu0 0
    %724 = vmatpush2.bf16.msra.mxu0 0
    %725 = vmatprep.subr.bf16.mxu0 0
    %726 = vmatpush2.bf16.msra.mxu0 0
    %727 = vmatprep.subr.bf16.mxu0 0
    %728 = vmatpush2.bf16.msra.mxu0 0
    %729 = vmatprep.subr.bf16.mxu0 0
    %730 = vmatpush2.bf16.msra.mxu0 0
    %731 = vmatprep.subr.bf16.mxu0 0
    %732 = vmatpush2.bf16.msra.mxu0 0
    %733 = vmatprep.subr.bf16.mxu0 0
    %734 = vmatpush2.bf16.msra.mxu0 0
    %735 = vmatprep.subr.bf16.mxu0 0
    %736 = vmatpush2.bf16.msra.mxu0 0
    %737 = vmatprep.subr.bf16.mxu0 0
    %738 = vmatpush2.bf16.msra.mxu0 0
    %739 = vmatprep.mubr.bf16.mxu0 0
    %740 = vmatmul.mubr.bf16.gmra.mxu0 %v642
    %v741 = vpop.f32.mrf.mxu0
    %v742 = vadd.f32 0.0, %v741
    %v743 = vpop.f32.mrf.mxu0
    %v744 = vpop.f32.mrf.mxu0
    %v745 = vadd.f32 0.0, %v744
    %v746 = vpop.f32.mrf.mxu0
    %747 = vdwg.mxu0
    %v748 = vrot.slane %v742, 4
    %v749 = vadd.f32 %v742, %v748
    %v750 = vrot.slane %v749, 2
    %v751 = vadd.f32 %v749, %v750
    %v752 = vrot.slane %v751, 1
    %v753 = vadd.f32 %v751, %v752
    %v754 = vmul.f32 %v753, %v302
    %v755 = vmul.f32 %v742, %v742
    %v756 = vrot.slane %v755, 4
    %v757 = vadd.f32 %v755, %v756
    %v758 = vrot.slane %v757, 2
    %v759 = vadd.f32 %v757, %v758
    %v760 = vrot.slane %v759, 1
    %v761 = vadd.f32 %v759, %v760
    %v762 = vmul.f32 %v761, %v302
    %v763 = vmul.f32 %v754, %v754
    %v764 = vsub.f32 %v762, %v763
    %v765 = vmax.f32 %v764, 0.0
    %v766 = vld [vmem:[%s11] sm:$0x1]
    %v767 = vadd.f32 %v765, 1e-05
    %v768 = vrsqrt.pop %v767
    %v769 = vmul.f32 %v766, %v768
    %v770 = vld [vmem:[%s12] sm:$0x1]
    %v771 = vmul.f32 %v754, %v769
    %v772 = vsub.f32 %v770, %v771
    %v773 = vrot.slane %v745, 4
    %v774 = vadd.f32 %v745, %v773
    %v775 = vrot.slane %v774, 2
    %v776 = vadd.f32 %v774, %v775
    %v777 = vrot.slane %v776, 1
    %v778 = vadd.f32 %v776, %v777
    %v779 = vmul.f32 %v778, %v302
    %v780 = vmul.f32 %v745, %v745
    %v781 = vrot.slane %v780, 4
    %v782 = vadd.f32 %v780, %v781
    %v783 = vrot.slane %v782, 2
    %v784 = vadd.f32 %v782, %v783
    %v785 = vrot.slane %v784, 1
    %v786 = vadd.f32 %v784, %v785
    %v787 = vmul.f32 %v786, %v302
    %v788 = vmul.f32 %v779, %v779
    %v789 = vsub.f32 %v787, %v788
    %v790 = vmax.f32 %v789, 0.0
    %v791 = vadd.f32 %v790, 1e-05
    %v792 = vrsqrt.pop %v791
    %v793 = vmul.f32 %v766, %v792
    %v794 = vmul.f32 %v779, %v793
    %v795 = vsub.f32 %v770, %v794
    %v797 = vlaneseq
    %v798 = vshrl.u32 %v797, 7
    %v799 = vsub.s32 0, %v798
    %v800 = vrot.slane %v769, %v799
    %v802 = vmul.f32 %v742, %v800
    %v804 = vlaneseq
    %v805 = vshrl.u32 %v804, 7
    %v806 = vsub.s32 0, %v805
    %v807 = vrot.slane %v772, %v806
    %v809 = vadd.f32 %v802, %v807
    %vm810 = vcmp.gt.f32.partialorder %v809, 0.0
    %v811 = vmul.f32 %v809, 0.1
    %v812 = vsel %vm810, %v809, %v811
    %v814 = vlaneseq
    %v815 = vshrl.u32 %v814, 7
    %v816 = vsub.s32 0, %v815
    %v817 = vrot.slane %v793, %v816
    %v819 = vmul.f32 %v745, %v817
    %v821 = vlaneseq
    %v822 = vshrl.u32 %v821, 7
    %v823 = vsub.s32 0, %v822
    %v824 = vrot.slane %v795, %v823
    %v826 = vadd.f32 %v819, %v824
    %vm827 = vcmp.gt.f32.partialorder %v826, 0.0
    %v828 = vmul.f32 %v826, 0.1
    %v829 = vsel %vm827, %v826, %v828
    %v830 = vpack.c.bf16 %v829, %v812
    %v831 = vld [vmem:[#allocation13] sm:$0xf]
    %v832 = vld [vmem:[#allocation13 + $0x4] sm:$0xf]
    %v833 = vld [vmem:[#allocation13 + $0x8] sm:$0xf]
    %v834 = vld [vmem:[#allocation13 + $0xc] sm:$0xf]
    %v835 = vld [vmem:[#allocation13 + $0x10] sm:$0xf]
    %v836 = vld [vmem:[#allocation13 + $0x14] sm:$0xf]
    %v837 = vld [vmem:[#allocation13 + $0x18] sm:$0xf]
    %v838 = vld [vmem:[#allocation13 + $0x1c] sm:$0xf]
    %v839 = vld [vmem:[#allocation13 + $0x20] sm:$0xf]
    %v840 = vld [vmem:[#allocation13 + $0x24] sm:$0xf]
    %v841 = vld [vmem:[#allocation13 + $0x28] sm:$0xf]
    %v842 = vld [vmem:[#allocation13 + $0x2c] sm:$0xf]
    %v843 = vld [vmem:[#allocation13 + $0x30] sm:$0xf]
    %v844 = vld [vmem:[#allocation13 + $0x34] sm:$0xf]
    %v845 = vld [vmem:[#allocation13 + $0x38] sm:$0xf]
    %v846 = vld [vmem:[#allocation13 + $0x3c] sm:$0xf]
    %v863 = vunpack.c.l.b16 %v831
    %v864 = vunpack.c.l.b16 %v832
    %v865 = vunpack.c.l.b16 %v833
    %v866 = vunpack.c.l.b16 %v834
    %v867 = vunpack.c.l.b16 %v835
    %v868 = vunpack.c.l.b16 %v836
    %v869 = vunpack.c.l.b16 %v837
    %v870 = vunpack.c.l.b16 %v838
    %v871 = vunpack.c.l.b16 %v839
    %v872 = vunpack.c.l.b16 %v840
    %v873 = vunpack.c.l.b16 %v841
    %v874 = vunpack.c.l.b16 %v842
    %v875 = vunpack.c.l.b16 %v843
    %v876 = vunpack.c.l.b16 %v844
    %v877 = vunpack.c.l.b16 %v845
    %v878 = vunpack.c.l.b16 %v846
    %v879 = vpack.c.b16 %v864, %v863
    %v880 = vpack.c.b16 %v866, %v865
    %v881 = vpack.c.b16 %v868, %v867
    %v882 = vpack.c.b16 %v870, %v869
    %v883 = vpack.c.b16 %v872, %v871
    %v884 = vpack.c.b16 %v874, %v873
    %v885 = vpack.c.b16 %v876, %v875
    %v886 = vpack.c.b16 %v878, %v877
    %895 = vmatprep.subr.bf16.mxu0 0
    %896 = vmatpush1.bf16.msra.mxu0 %v886
    %897 = vmatprep.subr.bf16.mxu0 0
    %898 = vmatpush1.bf16.msra.mxu0 %v885
    %899 = vmatprep.subr.bf16.mxu0 0
    %900 = vmatpush1.bf16.msra.mxu0 %v884
    %901 = vmatprep.subr.bf16.mxu0 0
    %902 = vmatpush1.bf16.msra.mxu0 %v883
    %903 = vmatprep.subr.bf16.mxu0 0
    %904 = vmatpush1.bf16.msra.mxu0 %v882
    %905 = vmatprep.subr.bf16.mxu0 0
    %906 = vmatpush1.bf16.msra.mxu0 %v881
    %907 = vmatprep.subr.bf16.mxu0 0
    %908 = vmatpush1.bf16.msra.mxu0 %v880
    %909 = vmatprep.subr.bf16.mxu0 0
    %910 = vmatpush1.bf16.msra.mxu0 %v879
    %911 = vmatprep.subr.bf16.mxu0 0
    %912 = vmatpush2.bf16.msra.mxu0 0
    %913 = vmatprep.subr.bf16.mxu0 0
    %914 = vmatpush2.bf16.msra.mxu0 0
    %915 = vmatprep.subr.bf16.mxu0 0
    %916 = vmatpush2.bf16.msra.mxu0 0
    %917 = vmatprep.subr.bf16.mxu0 0
    %918 = vmatpush2.bf16.msra.mxu0 0
    %919 = vmatprep.subr.bf16.mxu0 0
    %920 = vmatpush2.bf16.msra.mxu0 0
    %921 = vmatprep.subr.bf16.mxu0 0
    %922 = vmatpush2.bf16.msra.mxu0 0
    %923 = vmatprep.subr.bf16.mxu0 0
    %924 = vmatpush2.bf16.msra.mxu0 0
    %925 = vmatprep.subr.bf16.mxu0 0
    %926 = vmatpush2.bf16.msra.mxu0 0
    %927 = vmatprep.mubr.bf16.mxu0 0
    %928 = vmatmul.mubr.bf16.gmra.mxu0 %v830
    %v929 = vpop.f32.mrf.mxu0
    %v930 = vadd.f32 0.0, %v929
    %v931 = vpop.f32.mrf.mxu0
    %v932 = vpop.f32.mrf.mxu0
    %v933 = vadd.f32 0.0, %v932
    %v934 = vpop.f32.mrf.mxu0
    %935 = vdwg.mxu0
    %v936 = vrot.slane %v930, 4
    %v937 = vadd.f32 %v930, %v936
    %v938 = vrot.slane %v937, 2
    %v939 = vadd.f32 %v937, %v938
    %v940 = vrot.slane %v939, 1
    %v941 = vadd.f32 %v939, %v940
    %v942 = vmul.f32 %v941, %v302
    %v943 = vmul.f32 %v930, %v930
    %v944 = vrot.slane %v943, 4
    %v945 = vadd.f32 %v943, %v944
    %v946 = vrot.slane %v945, 2
    %v947 = vadd.f32 %v945, %v946
    %v948 = vrot.slane %v947, 1
    %v949 = vadd.f32 %v947, %v948
    %v950 = vmul.f32 %v949, %v302
    %v951 = vmul.f32 %v942, %v942
    %v952 = vsub.f32 %v950, %v951
    %v953 = vmax.f32 %v952, 0.0
    %v954 = vld [vmem:[%s14] sm:$0x1]
    %v955 = vadd.f32 %v953, 1e-05
    %v956 = vrsqrt.pop %v955
    %v957 = vmul.f32 %v954, %v956
    %v958 = vld [vmem:[%s15] sm:$0x1]
    %v959 = vmul.f32 %v942, %v957
    %v960 = vsub.f32 %v958, %v959
    %v961 = vrot.slane %v933, 4
    %v962 = vadd.f32 %v933, %v961
    %v963 = vrot.slane %v962, 2
    %v964 = vadd.f32 %v962, %v963
    %v965 = vrot.slane %v964, 1
    %v966 = vadd.f32 %v964, %v965
    %v967 = vmul.f32 %v966, %v302
    %v968 = vmul.f32 %v933, %v933
    %v969 = vrot.slane %v968, 4
    %v970 = vadd.f32 %v968, %v969
    %v971 = vrot.slane %v970, 2
    %v972 = vadd.f32 %v970, %v971
    %v973 = vrot.slane %v972, 1
    %v974 = vadd.f32 %v972, %v973
    %v975 = vmul.f32 %v974, %v302
    %v976 = vmul.f32 %v967, %v967
    %v977 = vsub.f32 %v975, %v976
    %v978 = vmax.f32 %v977, 0.0
    %v979 = vadd.f32 %v978, 1e-05
    %v980 = vrsqrt.pop %v979
    %v981 = vmul.f32 %v954, %v980
    %v982 = vmul.f32 %v967, %v981
    %v983 = vsub.f32 %v958, %v982
    %v985 = vlaneseq
    %v986 = vshrl.u32 %v985, 7
    %v987 = vsub.s32 0, %v986
    %v988 = vrot.slane %v957, %v987
    %v990 = vmul.f32 %v930, %v988
    %v992 = vlaneseq
    %v993 = vshrl.u32 %v992, 7
    %v994 = vsub.s32 0, %v993
    %v995 = vrot.slane %v960, %v994
    %v997 = vadd.f32 %v990, %v995
    %vm998 = vcmp.gt.f32.partialorder %v997, 0.0
    %v999 = vmul.f32 %v997, 0.1
    %v1000 = vsel %vm998, %v997, %v999
    %v1002 = vlaneseq
    %v1003 = vshrl.u32 %v1002, 7
    %v1004 = vsub.s32 0, %v1003
    %v1005 = vrot.slane %v981, %v1004
    %v1007 = vmul.f32 %v933, %v1005
    %v1009 = vlaneseq
    %v1010 = vshrl.u32 %v1009, 7
    %v1011 = vsub.s32 0, %v1010
    %v1012 = vrot.slane %v983, %v1011
    %v1014 = vadd.f32 %v1007, %v1012
    %vm1015 = vcmp.gt.f32.partialorder %v1014, 0.0
    %v1016 = vmul.f32 %v1014, 0.1
    %v1017 = vsel %vm1015, %v1014, %v1016
    %v1018 = vpack.c.bf16 %v1017, %v1000
    %v1019 = vld [vmem:[#allocation14] sm:$0xf]
    %v1020 = vld [vmem:[#allocation14 + $0x4] sm:$0xf]
    %v1021 = vld [vmem:[#allocation14 + $0x8] sm:$0xf]
    %v1022 = vld [vmem:[#allocation14 + $0xc] sm:$0xf]
    %v1023 = vld [vmem:[#allocation14 + $0x10] sm:$0xf]
    %v1024 = vld [vmem:[#allocation14 + $0x14] sm:$0xf]
    %v1025 = vld [vmem:[#allocation14 + $0x18] sm:$0xf]
    %v1026 = vld [vmem:[#allocation14 + $0x1c] sm:$0xf]
    %v1027 = vld [vmem:[#allocation14 + $0x20] sm:$0xf]
    %v1028 = vld [vmem:[#allocation14 + $0x24] sm:$0xf]
    %v1029 = vld [vmem:[#allocation14 + $0x28] sm:$0xf]
    %v1030 = vld [vmem:[#allocation14 + $0x2c] sm:$0xf]
    %v1031 = vld [vmem:[#allocation14 + $0x30] sm:$0xf]
    %v1032 = vld [vmem:[#allocation14 + $0x34] sm:$0xf]
    %v1033 = vld [vmem:[#allocation14 + $0x38] sm:$0xf]
    %v1034 = vld [vmem:[#allocation14 + $0x3c] sm:$0xf]
    %v1035 = vld [vmem:[%s17] sm:$0x1]
    %v1037 = vlaneseq
    %v1038 = vshrl.u32 %v1037, 7
    %v1039 = vsub.s32 0, %v1038
    %v1040 = vrot.slane %v1035, %v1039
    %v1058 = vunpack.c.l.b16 %v1019
    %v1059 = vunpack.c.l.b16 %v1020
    %v1060 = vunpack.c.l.b16 %v1021
    %v1061 = vunpack.c.l.b16 %v1022
    %v1062 = vunpack.c.l.b16 %v1023
    %v1063 = vunpack.c.l.b16 %v1024
    %v1064 = vunpack.c.l.b16 %v1025
    %v1065 = vunpack.c.l.b16 %v1026
    %v1066 = vunpack.c.l.b16 %v1027
    %v1067 = vunpack.c.l.b16 %v1028
    %v1068 = vunpack.c.l.b16 %v1029
    %v1069 = vunpack.c.l.b16 %v1030
    %v1070 = vunpack.c.l.b16 %v1031
    %v1071 = vunpack.c.l.b16 %v1032
    %v1072 = vunpack.c.l.b16 %v1033
    %v1073 = vunpack.c.l.b16 %v1034
    %v1074 = vpack.c.b16 %v1059, %v1058
    %v1075 = vpack.c.b16 %v1061, %v1060
    %v1076 = vpack.c.b16 %v1063, %v1062
    %v1077 = vpack.c.b16 %v1065, %v1064
    %v1078 = vpack.c.b16 %v1067, %v1066
    %v1079 = vpack.c.b16 %v1069, %v1068
    %v1080 = vpack.c.b16 %v1071, %v1070
    %v1081 = vpack.c.b16 %v1073, %v1072
    %1090 = vmatprep.subr.bf16.mxu0 0
    %1091 = vmatpush1.bf16.msra.mxu0 %v1081
    %1092 = vmatprep.subr.bf16.mxu0 0
    %1093 = vmatpush1.bf16.msra.mxu0 %v1080
    %1094 = vmatprep.subr.bf16.mxu0 0
    %1095 = vmatpush1.bf16.msra.mxu0 %v1079
    %1096 = vmatprep.subr.bf16.mxu0 0
    %1097 = vmatpush1.bf16.msra.mxu0 %v1078
    %1098 = vmatprep.subr.bf16.mxu0 0
    %1099 = vmatpush1.bf16.msra.mxu0 %v1077
    %1100 = vmatprep.subr.bf16.mxu0 0
    %1101 = vmatpush1.bf16.msra.mxu0 %v1076
    %1102 = vmatprep.subr.bf16.mxu0 0
    %1103 = vmatpush1.bf16.msra.mxu0 %v1075
    %1104 = vmatprep.subr.bf16.mxu0 0
    %1105 = vmatpush1.bf16.msra.mxu0 %v1074
    %1106 = vmatprep.subr.bf16.mxu0 0
    %1107 = vmatpush2.bf16.msra.mxu0 0
    %1108 = vmatprep.subr.bf16.mxu0 0
    %1109 = vmatpush2.bf16.msra.mxu0 0
    %1110 = vmatprep.subr.bf16.mxu0 0
    %1111 = vmatpush2.bf16.msra.mxu0 0
    %1112 = vmatprep.subr.bf16.mxu0 0
    %1113 = vmatpush2.bf16.msra.mxu0 0
    %1114 = vmatprep.subr.bf16.mxu0 0
    %1115 = vmatpush2.bf16.msra.mxu0 0
    %1116 = vmatprep.subr.bf16.mxu0 0
    %1117 = vmatpush2.bf16.msra.mxu0 0
    %1118 = vmatprep.subr.bf16.mxu0 0
    %1119 = vmatpush2.bf16.msra.mxu0 0
    %1120 = vmatprep.subr.bf16.mxu0 0
    %1121 = vmatpush2.bf16.msra.mxu0 0
    %1122 = vmatprep.mubr.bf16.mxu0 0
    %1123 = vmatmul.mubr.bf16.gmra.mxu0 %v1018
    %v1124 = vpop.f32.mrf.mxu0
    %v1125 = vadd.f32 %v1040, %v1124
    %v1126 = vpop.f32.mrf.mxu0
    %v1127 = vpop.f32.mrf.mxu0
    %v1128 = vadd.f32 %v1040, %v1127
    %v1129 = vpop.f32.mrf.mxu0
    %1130 = vdwg.mxu0
    %v1131 = vld [vmem:[#allocation16] sm:$0xff]
    %v1132 = vld [vmem:[#allocation16 + $0x8] sm:$0xff]
    %v1133 = vld [vmem:[#allocation16 + $0x10] sm:$0xff]
    %v1134 = vld [vmem:[#allocation16 + $0x18] sm:$0xff]
    %v1135 = vld [vmem:[#allocation16 + $0x20] sm:$0xff]
    %v1136 = vld [vmem:[#allocation16 + $0x28] sm:$0xff]
    %v1137 = vld [vmem:[#allocation16 + $0x30] sm:$0xff]
    %v1138 = vld [vmem:[#allocation16 + $0x38] sm:$0xff]
    %v1139 = vld [vmem:[#allocation16 + $0x40] sm:$0xff]
    %v1140 = vld [vmem:[#allocation16 + $0x48] sm:$0xff]
    %v1141 = vld [vmem:[#allocation16 + $0x50] sm:$0xff]
    %v1142 = vld [vmem:[#allocation16 + $0x58] sm:$0xff]
    %v1143 = vld [vmem:[#allocation16 + $0x60] sm:$0xff]
    %v1144 = vld [vmem:[#allocation16 + $0x68] sm:$0xff]
    %v1145 = vld [vmem:[#allocation16 + $0x70] sm:$0xff]
    %v1146 = vld [vmem:[#allocation16 + $0x78] sm:$0xff]
    %v1147 = vmul.f32 %v641, %v641
    %1148 = vadd.xlane.f32.xlu0 %v1147
    %v1149 = vpop.xlane.xlu0 %1148
    %v1150 = vmul.f32 %v1131, %v1131
    %v1151 = vmul.f32 %v1132, %v1132
    %v1152 = vmul.f32 %v1133, %v1133
    %v1153 = vmul.f32 %v1134, %v1134
    %v1154 = vmul.f32 %v1135, %v1135
    %v1155 = vmul.f32 %v1136, %v1136
    %v1156 = vmul.f32 %v1137, %v1137
    %v1157 = vmul.f32 %v1138, %v1138
    %v1158 = vmul.f32 %v1139, %v1139
    %v1159 = vmul.f32 %v1140, %v1140
    %v1160 = vmul.f32 %v1141, %v1141
    %v1161 = vmul.f32 %v1142, %v1142
    %v1162 = vmul.f32 %v1143, %v1143
    %v1163 = vmul.f32 %v1144, %v1144
    %v1164 = vmul.f32 %v1145, %v1145
    %v1165 = vmul.f32 %v1146, %v1146
    %v1166 = vadd.f32 %v1150, %v1151
    %v1167 = vadd.f32 %v1166, %v1152
    %v1168 = vadd.f32 %v1167, %v1153
    %v1169 = vadd.f32 %v1168, %v1154
    %v1170 = vadd.f32 %v1169, %v1155
    %v1171 = vadd.f32 %v1170, %v1156
    %v1172 = vadd.f32 %v1171, %v1157
    %v1173 = vadd.f32 %v1172, %v1158
    %v1174 = vadd.f32 %v1173, %v1159
    %v1175 = vadd.f32 %v1174, %v1160
    %v1176 = vadd.f32 %v1175, %v1161
    %v1177 = vadd.f32 %v1176, %v1162
    %v1178 = vadd.f32 %v1177, %v1163
    %v1179 = vadd.f32 %v1178, %v1164
    %v1180 = vadd.f32 %v1179, %v1165
    %v1181 = vrot.slane %v1180, 4
    %v1182 = vadd.f32 %v1180, %v1181
    %v1183 = vrot.slane %v1182, 2
    %v1184 = vadd.f32 %v1182, %v1183
    %v1185 = vrot.slane %v1184, 1
    %v1186 = vadd.f32 %v1184, %v1185
    %1187 = vmatprep.subr.mxu0 0.0
    %1188 = vmatpush1.msra.mxu0 %v1146
    %1189 = vmatprep.subr.mxu0 0.0
    %1190 = vmatpush1.msra.mxu0 %v1145
    %1191 = vmatprep.subr.mxu0 0.0
    %1192 = vmatpush1.msra.mxu0 %v1144
    %1193 = vmatprep.subr.mxu0 0.0
    %1194 = vmatpush1.msra.mxu0 %v1143
    %1195 = vmatprep.subr.mxu0 0.0
    %1196 = vmatpush1.msra.mxu0 %v1142
    %1197 = vmatprep.subr.mxu0 0.0
    %1198 = vmatpush1.msra.mxu0 %v1141
    %1199 = vmatprep.subr.mxu0 0.0
    %1200 = vmatpush1.msra.mxu0 %v1140
    %1201 = vmatprep.subr.mxu0 0.0
    %1202 = vmatpush1.msra.mxu0 %v1139
    %1203 = vmatprep.subr.mxu0 0.0
    %1204 = vmatpush1.msra.mxu0 %v1138
    %1205 = vmatprep.subr.mxu0 0.0
    %1206 = vmatpush1.msra.mxu0 %v1137
    %1207 = vmatprep.subr.mxu0 0.0
    %1208 = vmatpush1.msra.mxu0 %v1136
    %1209 = vmatprep.subr.mxu0 0.0
    %1210 = vmatpush1.msra.mxu0 %v1135
    %1211 = vmatprep.subr.mxu0 0.0
    %1212 = vmatpush1.msra.mxu0 %v1134
    %1213 = vmatprep.subr.mxu0 0.0
    %1214 = vmatpush1.msra.mxu0 %v1133
    %1215 = vmatprep.subr.mxu0 0.0
    %1216 = vmatpush1.msra.mxu0 %v1132
    %1217 = vmatprep.subr.mxu0 0.0
    %1218 = vmatpush1.msra.mxu0 %v1131
    %1219 = vmatprep.subr.mxu0 0.0
    %1220 = vmatpush2.msra.mxu0 0.0
    %1221 = vmatprep.subr.mxu0 0.0
    %1222 = vmatpush2.msra.mxu0 0.0
    %1223 = vmatprep.subr.mxu0 0.0
    %1224 = vmatpush2.msra.mxu0 0.0
    %1225 = vmatprep.subr.mxu0 0.0
    %1226 = vmatpush2.msra.mxu0 0.0
    %1227 = vmatprep.subr.mxu0 0.0
    %1228 = vmatpush2.msra.mxu0 0.0
    %1229 = vmatprep.subr.mxu0 0.0
    %1230 = vmatpush2.msra.mxu0 0.0
    %1231 = vmatprep.subr.mxu0 0.0
    %1232 = vmatpush2.msra.mxu0 0.0
    %1233 = vmatprep.subr.mxu0 0.0
    %1234 = vmatpush2.msra.mxu0 0.0
    %1235 = vmatprep.subr.mxu0 0.0
    %1236 = vmatpush2.msra.mxu0 0.0
    %1237 = vmatprep.subr.mxu0 0.0
    %1238 = vmatpush2.msra.mxu0 0.0
    %1239 = vmatprep.subr.mxu0 0.0
    %1240 = vmatpush2.msra.mxu0 0.0
    %1241 = vmatprep.subr.mxu0 0.0
    %1242 = vmatpush2.msra.mxu0 0.0
    %1243 = vmatprep.subr.mxu0 0.0
    %1244 = vmatpush2.msra.mxu0 0.0
    %1245 = vmatprep.subr.mxu0 0.0
    %1246 = vmatpush2.msra.mxu0 0.0
    %1247 = vmatprep.subr.mxu0 0.0
    %1248 = vmatpush2.msra.mxu0 0.0
    %1249 = vmatprep.subr.mxu0 0.0
    %1250 = vmatpush2.msra.mxu0 0.0
    %1251 = vmatprep.mubr.f32.mxu0 0.0
    %1252 = vmatmul.mubr.f32.gmra.mxu0 %v641
    %v1253 = vpop.f32.mrf.mxu0
    %v1254 = vadd.f32 0.0, %v1253
    %v1255 = vpop.f32.mrf.mxu0
    %1256 = vdwg.mxu0
    %v1257 = vadd.f32 %v1149, %v1186
    %v1258 = vmul.f32 %v1254, 2.0
    %v1259 = vsub.f32 %v1257, %v1258
    %v1260 = vmax.f32 %v1259, 0.0
    %v1261 = vadd.f32 %v1260, 1.0
    %v1262 = vrcp.pop %v1261
    %v1263 = vlaneseq
    %v1264 = vand.u32 %v1263, 127
    %vm1265 = vcmp.lt.s32.totalorder %v1264, 4
    %v1266 = vsel %vm1265, 1, 0
    %vm1267 = vcmp.eq.s32.totalorder %v1266, 1
    %v1268 = vsel %vm1267, %v1262, 0.0
    %1269 = vadd.xlane.f32.xlu0 %v1268
    %v1270 = vpop.xlane.xlu0 %1269
    %v1271 = vrcp.pop %v1270
    %v1272 = vmul.f32 %v1268, %v1271
    %1273 = vst [vmem:[#allocation18] sm:$0xff] %v1125
    %1274 = vst [vmem:[#allocation17] sm:$0xff] %v1128
    %1275 = vst [vmem:[#allocation20] sm:$0xff] %v641
    %1276 = vst [vmem:[#allocation21] sm:$0xff] %v630
    %1277 = vst [vmem:[#allocation23] sm:$0xff] %v632
    %1278 = vst [vmem:[#allocation24] sm:$0xff] %v1272
    // Predicated region
    $region114: #{tpu_custom_call.1} parent=1 // pred_check
      _
    $region115: #{tpu_custom_call.1} parent=1 // pred_check_branch
      %1280 = sbr.rel (0) target = $region117
    $region116: #{tpu_custom_call.1} parent=1 // pred_region
      %s1282 = ssub.s32 128, 128
      %1283 = vsyncadd [#allocation4], %s1282
      %s1285 = sshll.u32 [#allocation17], 4
      %s1286 = int_to_ptr.vmem [resolvable:$true] %s1285
      %1288 = dma.vmem_to_hbm [thread:$0]  %s1286, 128, %s19, [#allocation4]
    $region117: #{tpu_custom_call.1} parent=1 // pred_fallthru
      _
    // Predicated region
    $region118: #{tpu_custom_call.1} parent=1 // pred_check
      _
    $region119: #{tpu_custom_call.1} parent=1 // pred_check_branch
      %1290 = sbr.rel (0) target = $region121
    $region120: #{tpu_custom_call.1} parent=1 // pred_region
      %s1292 = ssub.s32 128, 128
      %1293 = vsyncadd [#allocation19], %s1292
      %s1295 = sshll.u32 [#allocation18], 4
      %s1296 = int_to_ptr.vmem [resolvable:$true] %s1295
      %1298 = dma.vmem_to_hbm [thread:$0]  %s1296, 128, %s20, [#allocation19]
    $region121: #{tpu_custom_call.1} parent=1 // pred_fallthru
      _
    // Predicated region
    $region122: #{tpu_custom_call.1} parent=1 // pred_check
      _
    $region123: #{tpu_custom_call.1} parent=1 // pred_check_branch
      %1300 = sbr.rel (0) target = $region125
    $region124: #{tpu_custom_call.1} parent=1 // pred_region
      %s1302 = ssub.s32 128, 128
      %1303 = vsyncadd [#allocation19], %s1302
      %s1305 = sshll.u32 [#allocation20], 4
      %s1306 = int_to_ptr.vmem [resolvable:$true] %s1305
      %1308 = dma.vmem_to_hbm [thread:$0]  %s1306, 128, %s21, [#allocation19]
    $region125: #{tpu_custom_call.1} parent=1 // pred_fallthru
      _
    // Predicated region
    $region126: #{tpu_custom_call.1} parent=1 // pred_check
      _
    $region127: #{tpu_custom_call.1} parent=1 // pred_check_branch
      %1310 = sbr.rel (0) target = $region129
    $region128: #{tpu_custom_call.1} parent=1 // pred_region
      %s1312 = ssub.s32 128, 128
      %1313 = vsyncadd [#allocation22], %s1312
      %s1315 = sshll.u32 [#allocation21], 4
      %s1316 = int_to_ptr.vmem [resolvable:$true] %s1315
      %1318 = dma.vmem_to_hbm [thread:$0]  %s1316, 128, %s22, [#allocation22]
    $region129: #{tpu_custom_call.1} parent=1 // pred_fallthru
      _
    // Predicated region
    $region130: #{tpu_custom_call.1} parent=1 // pred_check
      _
    $region131: #{tpu_custom_call.1} parent=1 // pred_check_branch
      %1320 = sbr.rel (0) target = $region133
    $region132: #{tpu_custom_call.1} parent=1 // pred_region
      %s1322 = ssub.s32 128, 128
      %1323 = vsyncadd [#allocation22], %s1322
      %s1325 = sshll.u32 [#allocation23], 4
      %s1326 = int_to_ptr.vmem [resolvable:$true] %s1325
      %1328 = dma.vmem_to_hbm [thread:$0]  %s1326, 128, %s23, [#allocation22]
    $region133: #{tpu_custom_call.1} parent=1 // pred_fallthru
      _
    // Predicated region
    $region134: #{tpu_custom_call.1} parent=1 // pred_check
      _
    $region135: #{tpu_custom_call.1} parent=1 // pred_check_branch
      %1330 = sbr.rel (0) target = $region137
    $region136: #{tpu_custom_call.1} parent=1 // pred_region
      %s1332 = ssub.s32 128, 128
      %1333 = vsyncadd [#allocation25], %s1332
      %s1335 = sshll.u32 [#allocation24], 4
      %s1336 = int_to_ptr.vmem [resolvable:$true] %s1335
      %1338 = dma.vmem_to_hbm [thread:$0]  %s1336, 128, %s24, [#allocation25]
    $region137: #{tpu_custom_call.1} parent=1 // pred_fallthru
      _
    // Predicated region
    $region138: #{tpu_custom_call.1} parent=1 // pred_check
      _
    $region139: #{tpu_custom_call.1} parent=1 // pred_check_branch
      %1340 = sbr.rel (0) target = $region141
    $region140: #{tpu_custom_call.1} parent=1 // pred_region
      %1341 = dma.done [#allocation4], 128
    $region141: #{tpu_custom_call.1} parent=1 // pred_fallthru
      _
    // Predicated region
    $region142: #{tpu_custom_call.1} parent=1 // pred_check
      _
    $region143: #{tpu_custom_call.1} parent=1 // pred_check_branch
      %1343 = sbr.rel (0) target = $region145
    $region144: #{tpu_custom_call.1} parent=1 // pred_region
      %1344 = dma.done [#allocation19], 128
    $region145: #{tpu_custom_call.1} parent=1 // pred_fallthru
      _
    // Predicated region
    $region146: #{tpu_custom_call.1} parent=1 // pred_check
      _
    $region147: #{tpu_custom_call.1} parent=1 // pred_check_branch
      %1346 = sbr.rel (0) target = $region149
    $region148: #{tpu_custom_call.1} parent=1 // pred_region
      %1347 = dma.done [#allocation19], 128
    $region149: #{tpu_custom_call.1} parent=1 // pred_fallthru
      _
    // Predicated region
    $region150: #{tpu_custom_call.1} parent=1 // pred_check
      _
    $region151: #{tpu_custom_call.1} parent=1 // pred_check_branch
      %1349 = sbr.rel (0) target = $region153
    $region152: #{tpu_custom_call.1} parent=1 // pred_region
      %1350 = dma.done [#allocation22], 128
    $region153: #{tpu_custom_call.1} parent=1 // pred_fallthru
      _
    // Predicated region
    $region154: #{tpu_custom_call.1} parent=1 // pred_check
      _
    $region155: #{tpu_custom_call.1} parent=1 // pred_check_branch
      %1352 = sbr.rel (0) target = $region157
    $region156: #{tpu_custom_call.1} parent=1 // pred_region
      %1353 = dma.done [#allocation22], 128
    $region157: #{tpu_custom_call.1} parent=1 // pred_fallthru
      _
    // Predicated region
    $region158: #{tpu_custom_call.1} parent=1 // pred_check
      _
    $region159: #{tpu_custom_call.1} parent=1 // pred_check_branch
      %1355 = sbr.rel (0) target = $region161
    $region160: #{tpu_custom_call.1} parent=1 // pred_region
      %1356 = dma.done [#allocation25], 128
    $region161: #{tpu_custom_call.1} parent=1 // pred_fallthru
      _
    %1357 = vsyncpa [#allocation3], 1
    %1358 = vsyncpa [#allocation6], 1
    %1359 = vsyncpa [#allocation9], 1
    %1360 = vsyncpa [#allocation12], 1
    %1361 = vsyncpa [#allocation15], 1
    %1362 = vsyncpa [#allocation4], 1
    %1363 = vsyncpa [#allocation19], 1
    %1364 = vsyncpa [#allocation22], 1
    %1365 = vsyncpa [#allocation25], 1

</llo_original>
